<compile_context>
chip_gen: v7x
topology: tpu7x:2x2x1
jax: 0.10.0
libtpu: 0.0.40
codegen_flags: <defaults>
</compile_context>

<pallas_src>
import functools

import jax
import jax.numpy as jnp
from jax.experimental import pallas as pl
from jax.experimental.pallas import tpu as pltpu


# ----------------------------- Pallas kernel --------------------------------

def _rgcn_fused_kernel(a_ref, x_ref, w1_ref, b1_ref, w2_ref, b2_ref, o_ref,
                       *, n_rel, neg_slope):
    """Fused 2-layer RGCN forward over the global (block) node layout.

    a_ref : (R, N, N)        per-relation normalized adjacency, placed in its
                             (dst-block rows, src-block cols) position, 0 elsewhere
    x_ref : (N, F_in_p)      padded input features for all nodes
    w1_ref: (R, F_in_p, F_hid_p)   layer-1 weights (zero-padded)
    b1_ref: (N, F_hid_p)     layer-1 bias, pre-summed per dst node type
    w2_ref: (R, F_hid_p, F_out_p)  layer-2 weights (zero-padded)
    b2_ref: (N, F_out_p)     layer-2 bias, pre-summed per dst node type
    o_ref : (N, F_out_p)     output for all nodes (lane-dense, 128-multiple)
    """
    x = x_ref[...]

    # ---- layer 1: H = sum_r A_r @ (X @ W1_r) + b1_sum ----
    h = b1_ref[...]
    for r in range(n_rel):  # static unroll, R is tiny
        xw = jnp.dot(x, w1_ref[r], preferred_element_type=jnp.float32)
        h = h + jnp.dot(a_ref[r], xw, preferred_element_type=jnp.float32)

    # leaky_relu (F.leaky_relu default negative_slope=0.01)
    h = jnp.where(h > 0, h, neg_slope * h)

    # ---- layer 2: O = sum_r A_r @ (H @ W2_r) + b2_sum ----
    out = b2_ref[...]
    for r in range(n_rel):
        hw = jnp.dot(h, w2_ref[r], preferred_element_type=jnp.float32)
        out = out + jnp.dot(a_ref[r], hw, preferred_element_type=jnp.float32)

    o_ref[...] = out.astype(o_ref.dtype)


def rgcn_fused_call(a_blocks, x_pad, w1, b1, w2, b2):
    """Single pallas_call running the whole 2-layer forward."""
    n_rel, n_pad, _ = a_blocks.shape
    f_in_p = x_pad.shape[1]
    f_hid_p = w1.shape[2]
    f_out_p = w2.shape[2]

    kernel = functools.partial(_rgcn_fused_kernel, n_rel=n_rel, neg_slope=0.01)
    return pl.pallas_call(
        kernel,
        out_shape=jax.ShapeDtypeStruct((n_pad, f_out_p), jnp.float32),
        grid=(1,),
        in_specs=[
            pl.BlockSpec((n_rel, n_pad, n_pad), lambda i: (0, 0, 0)),
            pl.BlockSpec((n_pad, f_in_p), lambda i: (0, 0)),
            pl.BlockSpec((n_rel, f_in_p, f_hid_p), lambda i: (0, 0, 0)),
            pl.BlockSpec((n_pad, f_hid_p), lambda i: (0, 0)),
            pl.BlockSpec((n_rel, f_hid_p, f_out_p), lambda i: (0, 0, 0)),
            pl.BlockSpec((n_pad, f_out_p), lambda i: (0, 0)),
        ],
        out_specs=pl.BlockSpec((n_pad, f_out_p), lambda i: (0, 0)),
        compiler_params=pltpu.CompilerParams(dimension_semantics=("arbitrary",)),
    )(a_blocks, x_pad, w1, b1, w2, b2)


# ------------------------------- RGCN glue ----------------------------------

def _round_up(x, m):
    return ((x + m - 1) // m) * m


def normalize_adj(a):
    """DGL GraphConv norm='both': D_dst^{-1/2} A D_src^{-1/2}; zero-degree -> 0."""
    d_dst = a.sum(axis=1)
    d_src = a.sum(axis=0)
    inv_dst = jnp.where(d_dst > 0, jax.lax.rsqrt(d_dst), 0.0)
    inv_src = jnp.where(d_src > 0, jax.lax.rsqrt(d_src), 0.0)
    return inv_dst[:, None] * a * inv_src[None, :]


def prepare_static(adj_norm, params, relations, node_types, n_nodes,
                   in_feats, hid_feats, out_feats):
    """Build (once) the global block adjacency and padded/hoisted parameters."""
    offsets, off = {}, 0
    for nt in node_types:
        offsets[nt] = off
        off += n_nodes[nt]
    n_total = off
    n_pad = _round_up(n_total, 8)
    f_in_p = _round_up(in_feats, 128)
    f_hid_p = _round_up(hid_feats, 128)
    f_out_p = _round_up(out_feats, 128)
    n_rel = len(relations)

    a = jnp.zeros((n_rel, n_pad, n_pad), jnp.float32)
    w1 = jnp.zeros((n_rel, f_in_p, f_hid_p), jnp.float32)
    w2 = jnp.zeros((n_rel, f_hid_p, f_out_p), jnp.float32)
    b1 = jnp.zeros((n_pad, f_hid_p), jnp.float32)   # pre-summed per dst type
    b2 = jnp.zeros((n_pad, f_out_p), jnp.float32)

    for r, (src, rel, dst) in enumerate(relations):
        so, do = offsets[src], offsets[dst]
        ns, nd = n_nodes[src], n_nodes[dst]
        a = a.at[r, do:do + nd, so:so + ns].set(adj_norm[rel])
        w1 = w1.at[r, :in_feats, :hid_feats].set(params["w1"][rel])
        w2 = w2.at[r, :hid_feats, :out_feats].set(params["w2"][rel])
        b1 = b1.at[do:do + nd, :hid_feats].add(params["b1"][rel][None, :])
        b2 = b2.at[do:do + nd, :out_feats].add(params["b2"][rel][None, :])

    out_types = [nt for nt in node_types if any(d == nt for (_, _, d) in relations)]
    return {
        "a": a, "w1": w1, "b1": b1, "w2": w2, "b2": b2,
        "offsets": offsets, "n_nodes": dict(n_nodes),
        "n_pad": n_pad, "f_in_p": f_in_p, "out_feats": out_feats,
        "out_types": out_types,
    }


def rgcn_forward(static, feats):
    """Two-layer RGCN forward: pad X, one fused kernel, slice per node type."""
    x = jnp.zeros((static["n_pad"], static["f_in_p"]), jnp.float32)
    for nt, f in feats.items():
        off = static["offsets"][nt]
        x = x.at[off:off + f.shape[0], :f.shape[1]].set(f)

    out_pad = rgcn_fused_call(static["a"], x, static["w1"], static["b1"],
                              static["w2"], static["b2"])

    out = {}
    for nt in static["out_types"]:
        off = static["offsets"][nt]
        n = static["n_nodes"][nt]
        out[nt] = out_pad[off:off + n, :static["out_feats"]]
    return out


def rgcn_reference(adj_norm, feats, params, relations):
    """Pure-JAX reference (no Pallas) for correctness checking."""
    def layer(inputs, w_dict, b_dict):
        out = {}
        for (src, rel, dst) in relations:
            y = adj_norm[rel] @ (inputs[src] @ w_dict[rel]) + b_dict[rel]
            out[dst] = out.get(dst, 0.0) + y
        return out

    h = layer(feats, params["w1"], params["b1"])
    h = {k: jnp.where(v > 0, v, 0.01 * v) for k, v in h.items()}
    return layer(h, params["w2"], params["b2"])


# --------------------------------- main --------------------------------------

if __name__ == "__main__":
    key = jax.random.PRNGKey(0)

    # Small heterogeneous "disease-gene" graph.
    in_feats, hid_feats, out_feats = 16, 32, 8
    n_gene, n_disease = 16, 16
    node_types = ["gene", "disease"]
    relations = [
        ("gene", "interacts", "gene"),
        ("gene", "associates", "disease"),
        ("disease", "rev_associates", "gene"),
        ("disease", "similar", "disease"),
    ]
    rel_names = [r for (_, r, _) in relations]
    n_nodes = {"gene": n_gene, "disease": n_disease}

    # Deterministic random adjacency per relation, normalized like DGL GraphConv.
    keys = jax.random.split(key, 20)
    adj_norm = {}
    for i, (src, rel, dst) in enumerate(relations):
        a = jax.random.bernoulli(keys[i], 0.3, (n_nodes[dst], n_nodes[src])).astype(jnp.float32)
        adj_norm[rel] = normalize_adj(a)

    # Node input features.
    feats = {
        "gene": jax.random.normal(keys[8], (n_gene, in_feats), jnp.float32),
        "disease": jax.random.normal(keys[9], (n_disease, in_feats), jnp.float32),
    }

    # Deterministic parameter init (Xavier-uniform-ish weights; small random biases
    # so the bias-summation path is actually exercised).
    def xavier(k, shape):
        fan_in, fan_out = shape
        lim = (6.0 / (fan_in + fan_out)) ** 0.5
        return jax.random.uniform(k, shape, jnp.float32, -lim, lim)

    wkeys = jax.random.split(keys[10], 2 * len(rel_names))
    bkeys = jax.random.split(keys[11], 2 * len(rel_names))
    params = {
        "w1": {rel: xavier(wkeys[i], (in_feats, hid_feats)) for i, rel in enumerate(rel_names)},
        "b1": {rel: 0.1 * jax.random.normal(bkeys[i], (hid_feats,), jnp.float32)
               for i, rel in enumerate(rel_names)},
        "w2": {rel: xavier(wkeys[len(rel_names) + i], (hid_feats, out_feats))
               for i, rel in enumerate(rel_names)},
        "b2": {rel: 0.1 * jax.random.normal(bkeys[len(rel_names) + i], (out_feats,), jnp.float32)
               for i, rel in enumerate(rel_names)},
    }

    static = prepare_static(adj_norm, params, relations, node_types, n_nodes,
                            in_feats, hid_feats, out_feats)

    out = rgcn_forward(static, feats)
    out = jax.tree_util.tree_map(jax.block_until_ready, out)

    ref = rgcn_reference(adj_norm, feats, params, relations)
    for nt in node_types:
        assert out[nt].shape == (n_nodes[nt], out_feats)
        assert jnp.allclose(out[nt], ref[nt], atol=1e-4, rtol=1e-4), nt

    print("KERNEL_OK")
</pallas_src>

<mosaic_0001>
module attributes {stable_mosaic.version = 11 : i64} {
  func.func @_rgcn_fused_kernel(%arg0: i32, %arg1: memref<4x32x32xf32, #tpu.memory_space<vmem>>, %arg2: memref<32x128xf32, #tpu.memory_space<vmem>>, %arg3: memref<4x128x128xf32, #tpu.memory_space<vmem>>, %arg4: memref<32x128xf32, #tpu.memory_space<vmem>>, %arg5: memref<4x128x128xf32, #tpu.memory_space<vmem>>, %arg6: memref<32x128xf32, #tpu.memory_space<vmem>>, %arg7: memref<32x128xf32, #tpu.memory_space<vmem>>) attributes {dimension_semantics = [#tpu.dimension_semantics<arbitrary>], iteration_bounds = array<i64: 1>, scalar_prefetch = 0 : i64, scratch_operands = 0 : i64, tpu.core_type = #tpu.core_type<tc>, window_params = [{pipeline_mode = #tpu.pipeline_mode<synchronous>, transform_indices = @transform_0, window_bounds = array<i64: 4, 32, 32>}, {pipeline_mode = #tpu.pipeline_mode<synchronous>, transform_indices = @transform_1, window_bounds = array<i64: 32, 128>}, {pipeline_mode = #tpu.pipeline_mode<synchronous>, transform_indices = @transform_2, window_bounds = array<i64: 4, 128, 128>}, {pipeline_mode = #tpu.pipeline_mode<synchronous>, transform_indices = @transform_3, window_bounds = array<i64: 32, 128>}, {pipeline_mode = #tpu.pipeline_mode<synchronous>, transform_indices = @transform_4, window_bounds = array<i64: 4, 128, 128>}, {pipeline_mode = #tpu.pipeline_mode<synchronous>, transform_indices = @transform_5, window_bounds = array<i64: 32, 128>}, {pipeline_mode = #tpu.pipeline_mode<synchronous>, transform_indices = @transform_6, window_bounds = array<i64: 32, 128>}]} {
    %c0 = arith.constant 0 : index
    %c0_0 = arith.constant 0 : index
    %0 = vector.load %arg2[%c0, %c0_0] : memref<32x128xf32, #tpu.memory_space<vmem>>, vector<32x128xf32>
    %c0_1 = arith.constant 0 : index
    %c0_2 = arith.constant 0 : index
    %1 = vector.load %arg4[%c0_1, %c0_2] : memref<32x128xf32, #tpu.memory_space<vmem>>, vector<32x128xf32>
    %c0_3 = arith.constant 0 : index
    %c0_4 = arith.constant 0 : index
    %c0_5 = arith.constant 0 : index
    %2 = vector.load %arg3[%c0_3, %c0_4, %c0_5] : memref<4x128x128xf32, #tpu.memory_space<vmem>>, vector<1x128x128xf32>
    %3 = vector.shape_cast %2 : vector<1x128x128xf32> to vector<128x128xf32>
    %cst = arith.constant dense<0.000000e+00> : vector<32x128xf32>
    %4 = tpu.matmul %0, %3, %cst {dimension_numbers = #tpu.dot_dimension_numbers<[1], [0], [0], [1], [0, 0, 1, 1], [], []>} : vector<32x128xf32>, vector<128x128xf32>, vector<32x128xf32> -> vector<32x128xf32>
    %c0_6 = arith.constant 0 : index
    %c0_7 = arith.constant 0 : index
    %c0_8 = arith.constant 0 : index
    %5 = vector.load %arg1[%c0_6, %c0_7, %c0_8] : memref<4x32x32xf32, #tpu.memory_space<vmem>>, vector<1x32x32xf32>
    %6 = vector.shape_cast %5 : vector<1x32x32xf32> to vector<32x32xf32>
    %cst_9 = arith.constant dense<0.000000e+00> : vector<32x128xf32>
    %7 = tpu.matmul %6, %4, %cst_9 {dimension_numbers = #tpu.dot_dimension_numbers<[1], [0], [0], [1], [0, 0, 1, 1], [], []>} : vector<32x32xf32>, vector<32x128xf32>, vector<32x128xf32> -> vector<32x128xf32>
    %8 = arith.addf %1, %7 : vector<32x128xf32>
    %c1 = arith.constant 1 : index
    %c0_10 = arith.constant 0 : index
    %c0_11 = arith.constant 0 : index
    %9 = vector.load %arg3[%c1, %c0_10, %c0_11] : memref<4x128x128xf32, #tpu.memory_space<vmem>>, vector<1x128x128xf32>
    %10 = vector.shape_cast %9 : vector<1x128x128xf32> to vector<128x128xf32>
    %cst_12 = arith.constant dense<0.000000e+00> : vector<32x128xf32>
    %11 = tpu.matmul %0, %10, %cst_12 {dimension_numbers = #tpu.dot_dimension_numbers<[1], [0], [0], [1], [0, 0, 1, 1], [], []>} : vector<32x128xf32>, vector<128x128xf32>, vector<32x128xf32> -> vector<32x128xf32>
    %c1_13 = arith.constant 1 : index
    %c0_14 = arith.constant 0 : index
    %c0_15 = arith.constant 0 : index
    %12 = vector.load %arg1[%c1_13, %c0_14, %c0_15] : memref<4x32x32xf32, #tpu.memory_space<vmem>>, vector<1x32x32xf32>
    %13 = vector.shape_cast %12 : vector<1x32x32xf32> to vector<32x32xf32>
    %cst_16 = arith.constant dense<0.000000e+00> : vector<32x128xf32>
    %14 = tpu.matmul %13, %11, %cst_16 {dimension_numbers = #tpu.dot_dimension_numbers<[1], [0], [0], [1], [0, 0, 1, 1], [], []>} : vector<32x32xf32>, vector<32x128xf32>, vector<32x128xf32> -> vector<32x128xf32>
    %15 = arith.addf %8, %14 : vector<32x128xf32>
    %c2 = arith.constant 2 : index
    %c0_17 = arith.constant 0 : index
    %c0_18 = arith.constant 0 : index
    %16 = vector.load %arg3[%c2, %c0_17, %c0_18] : memref<4x128x128xf32, #tpu.memory_space<vmem>>, vector<1x128x128xf32>
    %17 = vector.shape_cast %16 : vector<1x128x128xf32> to vector<128x128xf32>
    %cst_19 = arith.constant dense<0.000000e+00> : vector<32x128xf32>
    %18 = tpu.matmul %0, %17, %cst_19 {dimension_numbers = #tpu.dot_dimension_numbers<[1], [0], [0], [1], [0, 0, 1, 1], [], []>} : vector<32x128xf32>, vector<128x128xf32>, vector<32x128xf32> -> vector<32x128xf32>
    %c2_20 = arith.constant 2 : index
    %c0_21 = arith.constant 0 : index
    %c0_22 = arith.constant 0 : index
    %19 = vector.load %arg1[%c2_20, %c0_21, %c0_22] : memref<4x32x32xf32, #tpu.memory_space<vmem>>, vector<1x32x32xf32>
    %20 = vector.shape_cast %19 : vector<1x32x32xf32> to vector<32x32xf32>
    %cst_23 = arith.constant dense<0.000000e+00> : vector<32x128xf32>
    %21 = tpu.matmul %20, %18, %cst_23 {dimension_numbers = #tpu.dot_dimension_numbers<[1], [0], [0], [1], [0, 0, 1, 1], [], []>} : vector<32x32xf32>, vector<32x128xf32>, vector<32x128xf32> -> vector<32x128xf32>
    %22 = arith.addf %15, %21 : vector<32x128xf32>
    %c3 = arith.constant 3 : index
    %c0_24 = arith.constant 0 : index
    %c0_25 = arith.constant 0 : index
    %23 = vector.load %arg3[%c3, %c0_24, %c0_25] : memref<4x128x128xf32, #tpu.memory_space<vmem>>, vector<1x128x128xf32>
    %24 = vector.shape_cast %23 : vector<1x128x128xf32> to vector<128x128xf32>
    %cst_26 = arith.constant dense<0.000000e+00> : vector<32x128xf32>
    %25 = tpu.matmul %0, %24, %cst_26 {dimension_numbers = #tpu.dot_dimension_numbers<[1], [0], [0], [1], [0, 0, 1, 1], [], []>} : vector<32x128xf32>, vector<128x128xf32>, vector<32x128xf32> -> vector<32x128xf32>
    %c3_27 = arith.constant 3 : index
    %c0_28 = arith.constant 0 : index
    %c0_29 = arith.constant 0 : index
    %26 = vector.load %arg1[%c3_27, %c0_28, %c0_29] : memref<4x32x32xf32, #tpu.memory_space<vmem>>, vector<1x32x32xf32>
    %27 = vector.shape_cast %26 : vector<1x32x32xf32> to vector<32x32xf32>
    %cst_30 = arith.constant dense<0.000000e+00> : vector<32x128xf32>
    %28 = tpu.matmul %27, %25, %cst_30 {dimension_numbers = #tpu.dot_dimension_numbers<[1], [0], [0], [1], [0, 0, 1, 1], [], []>} : vector<32x32xf32>, vector<32x128xf32>, vector<32x128xf32> -> vector<32x128xf32>
    %29 = arith.addf %22, %28 : vector<32x128xf32>
    %cst_31 = arith.constant 0.000000e+00 : f32
    %30 = vector.broadcast %cst_31 : f32 to vector<32x128xf32>
    %31 = arith.cmpf ogt, %29, %30 : vector<32x128xf32>
    %cst_32 = arith.constant 0.00999999977 : f32
    %32 = vector.broadcast %cst_32 : f32 to vector<32x128xf32>
    %33 = arith.mulf %32, %29 : vector<32x128xf32>
    %34 = arith.select %31, %29, %33 : vector<32x128xi1>, vector<32x128xf32>
    %c0_33 = arith.constant 0 : index
    %c0_34 = arith.constant 0 : index
    %35 = vector.load %arg6[%c0_33, %c0_34] : memref<32x128xf32, #tpu.memory_space<vmem>>, vector<32x128xf32>
    %c0_35 = arith.constant 0 : index
    %c0_36 = arith.constant 0 : index
    %c0_37 = arith.constant 0 : index
    %36 = vector.load %arg5[%c0_35, %c0_36, %c0_37] : memref<4x128x128xf32, #tpu.memory_space<vmem>>, vector<1x128x128xf32>
    %37 = vector.shape_cast %36 : vector<1x128x128xf32> to vector<128x128xf32>
    %cst_38 = arith.constant dense<0.000000e+00> : vector<32x128xf32>
    %38 = tpu.matmul %34, %37, %cst_38 {dimension_numbers = #tpu.dot_dimension_numbers<[1], [0], [0], [1], [0, 0, 1, 1], [], []>} : vector<32x128xf32>, vector<128x128xf32>, vector<32x128xf32> -> vector<32x128xf32>
    %c0_39 = arith.constant 0 : index
    %c0_40 = arith.constant 0 : index
    %c0_41 = arith.constant 0 : index
    %39 = vector.load %arg1[%c0_39, %c0_40, %c0_41] : memref<4x32x32xf32, #tpu.memory_space<vmem>>, vector<1x32x32xf32>
    %40 = vector.shape_cast %39 : vector<1x32x32xf32> to vector<32x32xf32>
    %cst_42 = arith.constant dense<0.000000e+00> : vector<32x128xf32>
    %41 = tpu.matmul %40, %38, %cst_42 {dimension_numbers = #tpu.dot_dimension_numbers<[1], [0], [0], [1], [0, 0, 1, 1], [], []>} : vector<32x32xf32>, vector<32x128xf32>, vector<32x128xf32> -> vector<32x128xf32>
    %42 = arith.addf %35, %41 : vector<32x128xf32>
    %c1_43 = arith.constant 1 : index
    %c0_44 = arith.constant 0 : index
    %c0_45 = arith.constant 0 : index
    %43 = vector.load %arg5[%c1_43, %c0_44, %c0_45] : memref<4x128x128xf32, #tpu.memory_space<vmem>>, vector<1x128x128xf32>
    %44 = vector.shape_cast %43 : vector<1x128x128xf32> to vector<128x128xf32>
    %cst_46 = arith.constant dense<0.000000e+00> : vector<32x128xf32>
    %45 = tpu.matmul %34, %44, %cst_46 {dimension_numbers = #tpu.dot_dimension_numbers<[1], [0], [0], [1], [0, 0, 1, 1], [], []>} : vector<32x128xf32>, vector<128x128xf32>, vector<32x128xf32> -> vector<32x128xf32>
    %c1_47 = arith.constant 1 : index
    %c0_48 = arith.constant 0 : index
    %c0_49 = arith.constant 0 : index
    %46 = vector.load %arg1[%c1_47, %c0_48, %c0_49] : memref<4x32x32xf32, #tpu.memory_space<vmem>>, vector<1x32x32xf32>
    %47 = vector.shape_cast %46 : vector<1x32x32xf32> to vector<32x32xf32>
    %cst_50 = arith.constant dense<0.000000e+00> : vector<32x128xf32>
    %48 = tpu.matmul %47, %45, %cst_50 {dimension_numbers = #tpu.dot_dimension_numbers<[1], [0], [0], [1], [0, 0, 1, 1], [], []>} : vector<32x32xf32>, vector<32x128xf32>, vector<32x128xf32> -> vector<32x128xf32>
    %49 = arith.addf %42, %48 : vector<32x128xf32>
    %c2_51 = arith.constant 2 : index
    %c0_52 = arith.constant 0 : index
    %c0_53 = arith.constant 0 : index
    %50 = vector.load %arg5[%c2_51, %c0_52, %c0_53] : memref<4x128x128xf32, #tpu.memory_space<vmem>>, vector<1x128x128xf32>
    %51 = vector.shape_cast %50 : vector<1x128x128xf32> to vector<128x128xf32>
    %cst_54 = arith.constant dense<0.000000e+00> : vector<32x128xf32>
    %52 = tpu.matmul %34, %51, %cst_54 {dimension_numbers = #tpu.dot_dimension_numbers<[1], [0], [0], [1], [0, 0, 1, 1], [], []>} : vector<32x128xf32>, vector<128x128xf32>, vector<32x128xf32> -> vector<32x128xf32>
    %c2_55 = arith.constant 2 : index
    %c0_56 = arith.constant 0 : index
    %c0_57 = arith.constant 0 : index
    %53 = vector.load %arg1[%c2_55, %c0_56, %c0_57] : memref<4x32x32xf32, #tpu.memory_space<vmem>>, vector<1x32x32xf32>
    %54 = vector.shape_cast %53 : vector<1x32x32xf32> to vector<32x32xf32>
    %cst_58 = arith.constant dense<0.000000e+00> : vector<32x128xf32>
    %55 = tpu.matmul %54, %52, %cst_58 {dimension_numbers = #tpu.dot_dimension_numbers<[1], [0], [0], [1], [0, 0, 1, 1], [], []>} : vector<32x32xf32>, vector<32x128xf32>, vector<32x128xf32> -> vector<32x128xf32>
    %56 = arith.addf %49, %55 : vector<32x128xf32>
    %c3_59 = arith.constant 3 : index
    %c0_60 = arith.constant 0 : index
    %c0_61 = arith.constant 0 : index
    %57 = vector.load %arg5[%c3_59, %c0_60, %c0_61] : memref<4x128x128xf32, #tpu.memory_space<vmem>>, vector<1x128x128xf32>
    %58 = vector.shape_cast %57 : vector<1x128x128xf32> to vector<128x128xf32>
    %cst_62 = arith.constant dense<0.000000e+00> : vector<32x128xf32>
    %59 = tpu.matmul %34, %58, %cst_62 {dimension_numbers = #tpu.dot_dimension_numbers<[1], [0], [0], [1], [0, 0, 1, 1], [], []>} : vector<32x128xf32>, vector<128x128xf32>, vector<32x128xf32> -> vector<32x128xf32>
    %c3_63 = arith.constant 3 : index
    %c0_64 = arith.constant 0 : index
    %c0_65 = arith.constant 0 : index
    %60 = vector.load %arg1[%c3_63, %c0_64, %c0_65] : memref<4x32x32xf32, #tpu.memory_space<vmem>>, vector<1x32x32xf32>
    %61 = vector.shape_cast %60 : vector<1x32x32xf32> to vector<32x32xf32>
    %cst_66 = arith.constant dense<0.000000e+00> : vector<32x128xf32>
    %62 = tpu.matmul %61, %59, %cst_66 {dimension_numbers = #tpu.dot_dimension_numbers<[1], [0], [0], [1], [0, 0, 1, 1], [], []>} : vector<32x32xf32>, vector<32x128xf32>, vector<32x128xf32> -> vector<32x128xf32>
    %63 = arith.addf %56, %62 : vector<32x128xf32>
    %c0_67 = arith.constant 0 : index
    %c0_68 = arith.constant 0 : index
    %64 = vector.load %arg7[%c0_67, %c0_68] : memref<32x128xf32, #tpu.memory_space<vmem>>, vector<32x128xf32>
    tpu.vector_store %arg7[%c0_67, %c0_68], %63 {strides = array<i32>} : memref<32x128xf32, #tpu.memory_space<vmem>>, vector<32x128xf32>,
    return
  }
  func.func @transform_0(%arg0: i32) -> (i32, i32, i32) {
    %c0_i32 = arith.constant 0 : i32
    %c0_i32_0 = arith.constant 0 : i32
    %c0_i32_1 = arith.constant 0 : i32
    %c0_i32_2 = arith.constant 0 : i32
    return %c0_i32, %c0_i32_0, %c0_i32_1 : i32, i32, i32
  }
  func.func @transform_1(%arg0: i32) -> (i32, i32) {
    %c0_i32 = arith.constant 0 : i32
    %c0_i32_0 = arith.constant 0 : i32
    %c0_i32_1 = arith.constant 0 : i32
    return %c0_i32, %c0_i32_0 : i32, i32
  }
  func.func @transform_2(%arg0: i32) -> (i32, i32, i32) {
    %c0_i32 = arith.constant 0 : i32
    %c0_i32_0 = arith.constant 0 : i32
    %c0_i32_1 = arith.constant 0 : i32
    %c0_i32_2 = arith.constant 0 : i32
    return %c0_i32, %c0_i32_0, %c0_i32_1 : i32, i32, i32
  }
  func.func @transform_3(%arg0: i32) -> (i32, i32) {
    %c0_i32 = arith.constant 0 : i32
    %c0_i32_0 = arith.constant 0 : i32
    %c0_i32_1 = arith.constant 0 : i32
    return %c0_i32, %c0_i32_0 : i32, i32
  }
  func.func @transform_4(%arg0: i32) -> (i32, i32, i32) {
    %c0_i32 = arith.constant 0 : i32
    %c0_i32_0 = arith.constant 0 : i32
    %c0_i32_1 = arith.constant 0 : i32
    %c0_i32_2 = arith.constant 0 : i32
    return %c0_i32, %c0_i32_0, %c0_i32_1 : i32, i32, i32
  }
  func.func @transform_5(%arg0: i32) -> (i32, i32) {
    %c0_i32 = arith.constant 0 : i32
    %c0_i32_0 = arith.constant 0 : i32
    %c0_i32_1 = arith.constant 0 : i32
    return %c0_i32, %c0_i32_0 : i32, i32
  }
  func.func @transform_6(%arg0: i32) -> (i32, i32) {
    %c0_i32 = arith.constant 0 : i32
    %c0_i32_0 = arith.constant 0 : i32
    %c0_i32_1 = arith.constant 0 : i32
    return %c0_i32, %c0_i32_0 : i32, i32
  }
}

</mosaic_0001>

<llo_original>
// kernel: tpu_custom_call.1
$region0: #{tpu_custom_call.1}
  #allocation0 [shape = 'u32[]', space=smem, size = 0x4, offset = 0x4, fixed_abs, tag = 'smem constant byte address 0x4 - core index']
  #allocation1 [shape = 'u32[144,128]{1,0:T(1,128)}', space=vmem, size = 0x12000, scoped, tag = 'internal scratch']
  %s0 = inlined_call_operand.hbm [shape: f32[4,32,32], index: 0, kind: input, shape index: {}]
  %s1 = inlined_call_operand.hbm [shape: f32[32,128], index: 1, kind: input, shape index: {}]
  %s2 = inlined_call_operand.hbm [shape: f32[4,128,128], index: 2, kind: input, shape index: {}]
  %s3 = inlined_call_operand.hbm [shape: f32[32,128], index: 3, kind: input, shape index: {}]
  %s4 = inlined_call_operand.hbm [shape: f32[4,128,128], index: 4, kind: input, shape index: {}]
  %s5 = inlined_call_operand.hbm [shape: f32[32,128], index: 5, kind: input, shape index: {}]
  %s6 = inlined_call_operand.hbm [shape: f32[32,128], index: 6, kind: output, shape index: {}]
  %s7 = sld [smem:[#allocation0]]
  $region58: #{tpu_custom_call.1} parent=0
    _
  %s9 = ssub.s32 1, %s7
  %s10 = scalar_select 0, %s9, %s7
  $region1: #{tpu_custom_call.1} parent=0
    #allocation2 [shape = 'u8[65536]{0}', space=vmem, size = 0x10000, scoped, tag = 'input window, operand 0, single buffered']
    #allocation3 [shape = 's32[1]{0}', space=sflag, size = 0x4, scoped, tag = 'scoped memory for tpu_custom_call.1']
    #allocation4 [shape = 's32[1]{0}', space=sflag, size = 0x4, scoped, tag = 'scoped memory for tpu_custom_call.1']
    #allocation5 [shape = 'u8[16384]{0}', space=vmem, size = 0x4000, scoped, tag = 'input window, operand 1, single buffered']
    #allocation6 [shape = 's32[1]{0}', space=sflag, size = 0x4, scoped, tag = 'scoped memory for tpu_custom_call.1']
    #allocation7 [shape = 'u8[262144]{0}', space=vmem, size = 0x40000, scoped, tag = 'input window, operand 2, single buffered']
    #allocation8 [shape = 'u8[16384]{0}', space=vmem, size = 0x4000, scoped, tag = 'input window, operand 3, single buffered']
    #allocation9 [shape = 's32[1]{0}', space=sflag, size = 0x4, scoped, tag = 'scoped memory for tpu_custom_call.1']
    #allocation10 [shape = 'u8[262144]{0}', space=vmem, size = 0x40000, scoped, tag = 'input window, operand 4, single buffered']
    #allocation11 [shape = 'u8[16384]{0}', space=vmem, size = 0x4000, scoped, tag = 'input window, operand 5, single buffered']
    #allocation12 [shape = 's32[1]{0}', space=sflag, size = 0x4, scoped, tag = 'scoped memory for tpu_custom_call.1']
    #allocation13 [shape = 'u8[16384]{0}', space=vmem, size = 0x4000, scoped, tag = 'output window, operand 0, single buffered']
    %11 = vsyncpa [#allocation3], 0
    %12 = vsyncpa [#allocation6], 0
    %13 = vsyncpa [#allocation9], 0
    %14 = vsyncpa [#allocation12], 0
    %15 = vsyncpa [#allocation4], 0
    // Predicated region
    $region2: #{tpu_custom_call.1} parent=1 // pred_check
      _
    $region3: #{tpu_custom_call.1} parent=1 // pred_check_branch
      %17 = sbr.rel (0) target = $region5
    $region4: #{tpu_custom_call.1} parent=1 // pred_region
      %s19 = ssub.s32 2048, 2048
      %20 = vsyncadd [#allocation3], %s19
      %s21 = sshll.u32 [#allocation2], 4
      %s22 = int_to_ptr.vmem [resolvable:$true] %s21
      %27 = dma.hbm_to_vmem [thread:$0]  %s0, 2048, %s22, [#allocation3], 128, 128, 8
    $region5: #{tpu_custom_call.1} parent=1 // pred_fallthru
      _
    // Predicated region
    $region6: #{tpu_custom_call.1} parent=1 // pred_check
      _
    $region7: #{tpu_custom_call.1} parent=1 // pred_check_branch
      %29 = sbr.rel (0) target = $region9
    $region8: #{tpu_custom_call.1} parent=1 // pred_region
      %s31 = ssub.s32 512, 512
      %32 = vsyncadd [#allocation6], %s31
      %s33 = sshll.u32 [#allocation5], 4
      %s34 = int_to_ptr.vmem [resolvable:$true] %s33
      %39 = dma.hbm_to_vmem [thread:$0]  %s1, 512, %s34, [#allocation6], 128, 128, 8
    $region9: #{tpu_custom_call.1} parent=1 // pred_fallthru
      _
    // Predicated region
    $region10: #{tpu_custom_call.1} parent=1 // pred_check
      _
    $region11: #{tpu_custom_call.1} parent=1 // pred_check_branch
      %41 = sbr.rel (0) target = $region13
    $region12: #{tpu_custom_call.1} parent=1 // pred_region
      %s43 = ssub.s32 8192, 8192
      %44 = vsyncadd [#allocation6], %s43
      %s45 = sshll.u32 [#allocation7], 4
      %s46 = int_to_ptr.vmem [resolvable:$true] %s45
      %51 = dma.hbm_to_vmem [thread:$0]  %s2, 8192, %s46, [#allocation6], 128, 128, 8
    $region13: #{tpu_custom_call.1} parent=1 // pred_fallthru
      _
    // Predicated region
    $region14: #{tpu_custom_call.1} parent=1 // pred_check
      _
    $region15: #{tpu_custom_call.1} parent=1 // pred_check_branch
      %53 = sbr.rel (0) target = $region17
    $region16: #{tpu_custom_call.1} parent=1 // pred_region
      %s55 = ssub.s32 512, 512
      %56 = vsyncadd [#allocation9], %s55
      %s57 = sshll.u32 [#allocation8], 4
      %s58 = int_to_ptr.vmem [resolvable:$true] %s57
      %63 = dma.hbm_to_vmem [thread:$0]  %s3, 512, %s58, [#allocation9], 128, 128, 8
    $region17: #{tpu_custom_call.1} parent=1 // pred_fallthru
      _
    // Predicated region
    $region18: #{tpu_custom_call.1} parent=1 // pred_check
      _
    $region19: #{tpu_custom_call.1} parent=1 // pred_check_branch
      %65 = sbr.rel (0) target = $region21
    $region20: #{tpu_custom_call.1} parent=1 // pred_region
      %s67 = ssub.s32 8192, 8192
      %68 = vsyncadd [#allocation9], %s67
      %s69 = sshll.u32 [#allocation10], 4
      %s70 = int_to_ptr.vmem [resolvable:$true] %s69
      %75 = dma.hbm_to_vmem [thread:$0]  %s4, 8192, %s70, [#allocation9], 128, 128, 8
    $region21: #{tpu_custom_call.1} parent=1 // pred_fallthru
      _
    // Predicated region
    $region22: #{tpu_custom_call.1} parent=1 // pred_check
      _
    $region23: #{tpu_custom_call.1} parent=1 // pred_check_branch
      %77 = sbr.rel (0) target = $region25
    $region24: #{tpu_custom_call.1} parent=1 // pred_region
      %s79 = ssub.s32 512, 512
      %80 = vsyncadd [#allocation12], %s79
      %s81 = sshll.u32 [#allocation11], 4
      %s82 = int_to_ptr.vmem [resolvable:$true] %s81
      %87 = dma.hbm_to_vmem [thread:$0]  %s5, 512, %s82, [#allocation12], 128, 128, 8
    $region25: #{tpu_custom_call.1} parent=1 // pred_fallthru
      _
    // Predicated region
    $region26: #{tpu_custom_call.1} parent=1 // pred_check
      _
    $region27: #{tpu_custom_call.1} parent=1 // pred_check_branch
      %89 = sbr.rel (0) target = $region29
    $region28: #{tpu_custom_call.1} parent=1 // pred_region
      %90 = dma.done [#allocation3], 2048
    $region29: #{tpu_custom_call.1} parent=1 // pred_fallthru
      _
    // Predicated region
    $region30: #{tpu_custom_call.1} parent=1 // pred_check
      _
    $region31: #{tpu_custom_call.1} parent=1 // pred_check_branch
      %92 = sbr.rel (0) target = $region33
    $region32: #{tpu_custom_call.1} parent=1 // pred_region
      %93 = dma.done [#allocation6], 512
    $region33: #{tpu_custom_call.1} parent=1 // pred_fallthru
      _
    // Predicated region
    $region34: #{tpu_custom_call.1} parent=1 // pred_check
      _
    $region35: #{tpu_custom_call.1} parent=1 // pred_check_branch
      %95 = sbr.rel (0) target = $region37
    $region36: #{tpu_custom_call.1} parent=1 // pred_region
      %96 = dma.done [#allocation6], 8192
    $region37: #{tpu_custom_call.1} parent=1 // pred_fallthru
      _
    // Predicated region
    $region38: #{tpu_custom_call.1} parent=1 // pred_check
      _
    $region39: #{tpu_custom_call.1} parent=1 // pred_check_branch
      %98 = sbr.rel (0) target = $region41
    $region40: #{tpu_custom_call.1} parent=1 // pred_region
      %99 = dma.done [#allocation9], 512
    $region41: #{tpu_custom_call.1} parent=1 // pred_fallthru
      _
    // Predicated region
    $region42: #{tpu_custom_call.1} parent=1 // pred_check
      _
    $region43: #{tpu_custom_call.1} parent=1 // pred_check_branch
      %101 = sbr.rel (0) target = $region45
    $region44: #{tpu_custom_call.1} parent=1 // pred_region
      %102 = dma.done [#allocation9], 8192
    $region45: #{tpu_custom_call.1} parent=1 // pred_fallthru
      _
    // Predicated region
    $region46: #{tpu_custom_call.1} parent=1 // pred_check
      _
    $region47: #{tpu_custom_call.1} parent=1 // pred_check_branch
      %104 = sbr.rel (0) target = $region49
    $region48: #{tpu_custom_call.1} parent=1 // pred_region
      %105 = dma.done [#allocation12], 512
    $region49: #{tpu_custom_call.1} parent=1 // pred_fallthru
      _
    %v106 = vld [vmem:[#allocation5] sm:$0xff]
    %v107 = vld [vmem:[#allocation5 + $0x8] sm:$0xff]
    %v108 = vld [vmem:[#allocation5 + $0x10] sm:$0xff]
    %v109 = vld [vmem:[#allocation5 + $0x18] sm:$0xff]
    %v110 = vld [vmem:[#allocation8] sm:$0xff]
    %v111 = vld [vmem:[#allocation8 + $0x8] sm:$0xff]
    %v112 = vld [vmem:[#allocation8 + $0x10] sm:$0xff]
    %v113 = vld [vmem:[#allocation8 + $0x18] sm:$0xff]
    %v114 = vld [vmem:[#allocation7] sm:$0xff]
    %v115 = vld [vmem:[#allocation7 + $0x8] sm:$0xff]
    %v116 = vld [vmem:[#allocation7 + $0x10] sm:$0xff]
    %v117 = vld [vmem:[#allocation7 + $0x18] sm:$0xff]
    %v118 = vld [vmem:[#allocation7 + $0x20] sm:$0xff]
    %v119 = vld [vmem:[#allocation7 + $0x28] sm:$0xff]
    %v120 = vld [vmem:[#allocation7 + $0x30] sm:$0xff]
    %v121 = vld [vmem:[#allocation7 + $0x38] sm:$0xff]
    %v122 = vld [vmem:[#allocation7 + $0x40] sm:$0xff]
    %v123 = vld [vmem:[#allocation7 + $0x48] sm:$0xff]
    %v124 = vld [vmem:[#allocation7 + $0x50] sm:$0xff]
    %v125 = vld [vmem:[#allocation7 + $0x58] sm:$0xff]
    %v126 = vld [vmem:[#allocation7 + $0x60] sm:$0xff]
    %v127 = vld [vmem:[#allocation7 + $0x68] sm:$0xff]
    %v128 = vld [vmem:[#allocation7 + $0x70] sm:$0xff]
    %v129 = vld [vmem:[#allocation7 + $0x78] sm:$0xff]
    %130 = vmatprep.subr.mxu0 0.0
    %131 = vmatpush1.msra.mxu0 %v114
    %132 = vmatprep.subr.mxu0 0.0
    %133 = vmatpush1.msra.mxu0 %v115
    %134 = vmatprep.subr.mxu0 0.0
    %135 = vmatpush1.msra.mxu0 %v116
    %136 = vmatprep.subr.mxu0 0.0
    %137 = vmatpush1.msra.mxu0 %v117
    %138 = vmatprep.subr.mxu0 0.0
    %139 = vmatpush1.msra.mxu0 %v118
    %140 = vmatprep.subr.mxu0 0.0
    %141 = vmatpush1.msra.mxu0 %v119
    %142 = vmatprep.subr.mxu0 0.0
    %143 = vmatpush1.msra.mxu0 %v120
    %144 = vmatprep.subr.mxu0 0.0
    %145 = vmatpush1.msra.mxu0 %v121
    %146 = vmatprep.subr.mxu0 0.0
    %147 = vmatpush1.msra.mxu0 %v122
    %148 = vmatprep.subr.mxu0 0.0
    %149 = vmatpush1.msra.mxu0 %v123
    %150 = vmatprep.subr.mxu0 0.0
    %151 = vmatpush1.msra.mxu0 %v124
    %152 = vmatprep.subr.mxu0 0.0
    %153 = vmatpush1.msra.mxu0 %v125
    %154 = vmatprep.subr.mxu0 0.0
    %155 = vmatpush1.msra.mxu0 %v126
    %156 = vmatprep.subr.mxu0 0.0
    %157 = vmatpush1.msra.mxu0 %v127
    %158 = vmatprep.subr.mxu0 0.0
    %159 = vmatpush1.msra.mxu0 %v128
    %160 = vmatprep.subr.mxu0 0.0
    %161 = vmatpush1.msra.mxu0 %v129
    %162 = vmatprep.subr.mxu0 0.0
    %163 = vmatpush1.msra.mxu0 0.0
    %164 = vmatprep.subr.mxu0 0.0
    %165 = vmatpush1.msra.mxu0 0.0
    %166 = vmatprep.subr.mxu0 0.0
    %167 = vmatpush1.msra.mxu0 0.0
    %168 = vmatprep.subr.mxu0 0.0
    %169 = vmatpush1.msra.mxu0 0.0
    %170 = vmatprep.subr.mxu0 0.0
    %171 = vmatpush1.msra.mxu0 0.0
    %172 = vmatprep.subr.mxu0 0.0
    %173 = vmatpush1.msra.mxu0 0.0
    %174 = vmatprep.subr.mxu0 0.0
    %175 = vmatpush1.msra.mxu0 0.0
    %176 = vmatprep.subr.mxu0 0.0
    %177 = vmatpush1.msra.mxu0 0.0
    %178 = vmatprep.subr.mxu0 0.0
    %179 = vmatpush1.msra.mxu0 0.0
    %180 = vmatprep.subr.mxu0 0.0
    %181 = vmatpush1.msra.mxu0 0.0
    %182 = vmatprep.subr.mxu0 0.0
    %183 = vmatpush1.msra.mxu0 0.0
    %184 = vmatprep.subr.mxu0 0.0
    %185 = vmatpush1.msra.mxu0 0.0
    %186 = vmatprep.subr.mxu0 0.0
    %187 = vmatpush1.msra.mxu0 0.0
    %188 = vmatprep.subr.mxu0 0.0
    %189 = vmatpush1.msra.mxu0 0.0
    %190 = vmatprep.subr.mxu0 0.0
    %191 = vmatpush1.msra.mxu0 0.0
    %192 = vmatprep.subr.mxu0 0.0
    %193 = vmatpush1.msra.mxu0 0.0
    %194 = vmatprep.mubr.f32.mxu0 0.0
    %195 = vmatmul.mubr.f32.gmra.mrb[0].mxu0 %v106
    %v196 = vpop.f32.mrb[0].mxu0
    %v197 = vadd.f32 0.0, %v196
    %v198 = vpop.f32.mrb[0].mxu0
    %199 = vmatprep.mubr.f32.mxu0 0.0
    %200 = vmatmul.mubr.f32.gmra.mrb[0].mxu0 %v107
    %v201 = vpop.f32.mrb[0].mxu0
    %v202 = vadd.f32 0.0, %v201
    %v203 = vpop.f32.mrb[0].mxu0
    %204 = vmatprep.mubr.f32.mxu0 0.0
    %205 = vmatmul.mubr.f32.gmra.mrb[0].mxu0 %v108
    %v206 = vpop.f32.mrb[0].mxu0
    %v207 = vadd.f32 0.0, %v206
    %v208 = vpop.f32.mrb[0].mxu0
    %209 = vmatprep.mubr.f32.mxu0 0.0
    %210 = vmatmul.mubr.f32.gmra.mrb[0].mxu0 %v109
    %v211 = vpop.f32.mrb[0].mxu0
    %v212 = vadd.f32 0.0, %v211
    %v213 = vpop.f32.mrb[0].mxu0
    %214 = vdwg.mxu0
    %v215 = vld [vmem:[#allocation2] sm:$0xff]
    %v216 = vld [vmem:[#allocation2 + $0x8] sm:$0xff]
    %v217 = vld [vmem:[#allocation2 + $0x10] sm:$0xff]
    %v218 = vld [vmem:[#allocation2 + $0x18] sm:$0xff]
    %vm219 = vcmask 261120
    %v221 = vsel %vm219, %v215, 0
    %v224 = vsel %vm219, %v216, 0
    %v227 = vsel %vm219, %v217, 0
    %v230 = vsel %vm219, %v218, 0
    %232 = vmatprep.subr.mxu0 0.0
    %233 = vmatpush1.msra.mxu0 %v197
    %234 = vmatprep.subr.mxu0 0.0
    %235 = vmatpush1.msra.mxu0 %v202
    %236 = vmatprep.subr.mxu0 0.0
    %237 = vmatpush1.msra.mxu0 %v207
    %238 = vmatprep.subr.mxu0 0.0
    %239 = vmatpush1.msra.mxu0 %v212
    %240 = vmatprep.subr.mxu0 0.0
    %241 = vmatpush1.msra.mxu0 0.0
    %242 = vmatprep.subr.mxu0 0.0
    %243 = vmatpush1.msra.mxu0 0.0
    %244 = vmatprep.subr.mxu0 0.0
    %245 = vmatpush1.msra.mxu0 0.0
    %246 = vmatprep.subr.mxu0 0.0
    %247 = vmatpush1.msra.mxu0 0.0
    %248 = vmatprep.subr.mxu0 0.0
    %249 = vmatpush1.msra.mxu0 0.0
    %250 = vmatprep.subr.mxu0 0.0
    %251 = vmatpush1.msra.mxu0 0.0
    %252 = vmatprep.subr.mxu0 0.0
    %253 = vmatpush1.msra.mxu0 0.0
    %254 = vmatprep.subr.mxu0 0.0
    %255 = vmatpush1.msra.mxu0 0.0
    %256 = vmatprep.subr.mxu0 0.0
    %257 = vmatpush1.msra.mxu0 0.0
    %258 = vmatprep.subr.mxu0 0.0
    %259 = vmatpush1.msra.mxu0 0.0
    %260 = vmatprep.subr.mxu0 0.0
    %261 = vmatpush1.msra.mxu0 0.0
    %262 = vmatprep.subr.mxu0 0.0
    %263 = vmatpush1.msra.mxu0 0.0
    %264 = vmatprep.subr.mxu0 0.0
    %265 = vmatpush1.msra.mxu0 0.0
    %266 = vmatprep.subr.mxu0 0.0
    %267 = vmatpush1.msra.mxu0 0.0
    %268 = vmatprep.subr.mxu0 0.0
    %269 = vmatpush1.msra.mxu0 0.0
    %270 = vmatprep.subr.mxu0 0.0
    %271 = vmatpush1.msra.mxu0 0.0
    %272 = vmatprep.subr.mxu0 0.0
    %273 = vmatpush1.msra.mxu0 0.0
    %274 = vmatprep.subr.mxu0 0.0
    %275 = vmatpush1.msra.mxu0 0.0
    %276 = vmatprep.subr.mxu0 0.0
    %277 = vmatpush1.msra.mxu0 0.0
    %278 = vmatprep.subr.mxu0 0.0
    %279 = vmatpush1.msra.mxu0 0.0
    %280 = vmatprep.subr.mxu0 0.0
    %281 = vmatpush1.msra.mxu0 0.0
    %282 = vmatprep.subr.mxu0 0.0
    %283 = vmatpush1.msra.mxu0 0.0
    %284 = vmatprep.subr.mxu0 0.0
    %285 = vmatpush1.msra.mxu0 0.0
    %286 = vmatprep.subr.mxu0 0.0
    %287 = vmatpush1.msra.mxu0 0.0
    %288 = vmatprep.subr.mxu0 0.0
    %289 = vmatpush1.msra.mxu0 0.0
    %290 = vmatprep.subr.mxu0 0.0
    %291 = vmatpush1.msra.mxu0 0.0
    %292 = vmatprep.subr.mxu0 0.0
    %293 = vmatpush1.msra.mxu0 0.0
    %294 = vmatprep.subr.mxu0 0.0
    %295 = vmatpush1.msra.mxu0 0.0
    %296 = vmatprep.mubr.f32.mxu0 0.0
    %297 = vmatmul.mubr.f32.gmra.mrb[0].mxu0 %v221
    %v298 = vpop.f32.mrb[0].mxu0
    %v299 = vadd.f32 0.0, %v298
    %v300 = vpop.f32.mrb[0].mxu0
    %301 = vmatprep.mubr.f32.mxu0 0.0
    %302 = vmatmul.mubr.f32.gmra.mrb[0].mxu0 %v224
    %v303 = vpop.f32.mrb[0].mxu0
    %v304 = vadd.f32 0.0, %v303
    %v305 = vpop.f32.mrb[0].mxu0
    %306 = vmatprep.mubr.f32.mxu0 0.0
    %307 = vmatmul.mubr.f32.gmra.mrb[0].mxu0 %v227
    %v308 = vpop.f32.mrb[0].mxu0
    %v309 = vadd.f32 0.0, %v308
    %v310 = vpop.f32.mrb[0].mxu0
    %311 = vmatprep.mubr.f32.mxu0 0.0
    %312 = vmatmul.mubr.f32.gmra.mrb[0].mxu0 %v230
    %v313 = vpop.f32.mrb[0].mxu0
    %v314 = vadd.f32 0.0, %v313
    %v315 = vpop.f32.mrb[0].mxu0
    %316 = vdwg.mxu0
    %v317 = vadd.f32 %v110, %v299
    %v318 = vadd.f32 %v111, %v304
    %v319 = vadd.f32 %v112, %v309
    %v320 = vadd.f32 %v113, %v314
    %s321 = scalar_lea.vmem [#allocation7], 128
    %v322 = vld [vmem:[%s321] sm:$0xff]
    %v323 = vld [vmem:[%s321 + $0x8] sm:$0xff]
    %v324 = vld [vmem:[%s321 + $0x10] sm:$0xff]
    %v325 = vld [vmem:[%s321 + $0x18] sm:$0xff]
    %v326 = vld [vmem:[%s321 + $0x20] sm:$0xff]
    %v327 = vld [vmem:[%s321 + $0x28] sm:$0xff]
    %v328 = vld [vmem:[%s321 + $0x30] sm:$0xff]
    %v329 = vld [vmem:[%s321 + $0x38] sm:$0xff]
    %v330 = vld [vmem:[%s321 + $0x40] sm:$0xff]
    %v331 = vld [vmem:[%s321 + $0x48] sm:$0xff]
    %v332 = vld [vmem:[%s321 + $0x50] sm:$0xff]
    %v333 = vld [vmem:[%s321 + $0x58] sm:$0xff]
    %v334 = vld [vmem:[%s321 + $0x60] sm:$0xff]
    %v335 = vld [vmem:[%s321 + $0x68] sm:$0xff]
    %v336 = vld [vmem:[%s321 + $0x70] sm:$0xff]
    %v337 = vld [vmem:[%s321 + $0x78] sm:$0xff]
    %338 = vmatprep.subr.mxu0 0.0
    %339 = vmatpush1.msra.mxu0 %v322
    %340 = vmatprep.subr.mxu0 0.0
    %341 = vmatpush1.msra.mxu0 %v323
    %342 = vmatprep.subr.mxu0 0.0
    %343 = vmatpush1.msra.mxu0 %v324
    %344 = vmatprep.subr.mxu0 0.0
    %345 = vmatpush1.msra.mxu0 %v325
    %346 = vmatprep.subr.mxu0 0.0
    %347 = vmatpush1.msra.mxu0 %v326
    %348 = vmatprep.subr.mxu0 0.0
    %349 = vmatpush1.msra.mxu0 %v327
    %350 = vmatprep.subr.mxu0 0.0
    %351 = vmatpush1.msra.mxu0 %v328
    %352 = vmatprep.subr.mxu0 0.0
    %353 = vmatpush1.msra.mxu0 %v329
    %354 = vmatprep.subr.mxu0 0.0
    %355 = vmatpush1.msra.mxu0 %v330
    %356 = vmatprep.subr.mxu0 0.0
    %357 = vmatpush1.msra.mxu0 %v331
    %358 = vmatprep.subr.mxu0 0.0
    %359 = vmatpush1.msra.mxu0 %v332
    %360 = vmatprep.subr.mxu0 0.0
    %361 = vmatpush1.msra.mxu0 %v333
    %362 = vmatprep.subr.mxu0 0.0
    %363 = vmatpush1.msra.mxu0 %v334
    %364 = vmatprep.subr.mxu0 0.0
    %365 = vmatpush1.msra.mxu0 %v335
    %366 = vmatprep.subr.mxu0 0.0
    %367 = vmatpush1.msra.mxu0 %v336
    %368 = vmatprep.subr.mxu0 0.0
    %369 = vmatpush1.msra.mxu0 %v337
    %370 = vmatprep.subr.mxu0 0.0
    %371 = vmatpush1.msra.mxu0 0.0
    %372 = vmatprep.subr.mxu0 0.0
    %373 = vmatpush1.msra.mxu0 0.0
    %374 = vmatprep.subr.mxu0 0.0
    %375 = vmatpush1.msra.mxu0 0.0
    %376 = vmatprep.subr.mxu0 0.0
    %377 = vmatpush1.msra.mxu0 0.0
    %378 = vmatprep.subr.mxu0 0.0
    %379 = vmatpush1.msra.mxu0 0.0
    %380 = vmatprep.subr.mxu0 0.0
    %381 = vmatpush1.msra.mxu0 0.0
    %382 = vmatprep.subr.mxu0 0.0
    %383 = vmatpush1.msra.mxu0 0.0
    %384 = vmatprep.subr.mxu0 0.0
    %385 = vmatpush1.msra.mxu0 0.0
    %386 = vmatprep.subr.mxu0 0.0
    %387 = vmatpush1.msra.mxu0 0.0
    %388 = vmatprep.subr.mxu0 0.0
    %389 = vmatpush1.msra.mxu0 0.0
    %390 = vmatprep.subr.mxu0 0.0
    %391 = vmatpush1.msra.mxu0 0.0
    %392 = vmatprep.subr.mxu0 0.0
    %393 = vmatpush1.msra.mxu0 0.0
    %394 = vmatprep.subr.mxu0 0.0
    %395 = vmatpush1.msra.mxu0 0.0
    %396 = vmatprep.subr.mxu0 0.0
    %397 = vmatpush1.msra.mxu0 0.0
    %398 = vmatprep.subr.mxu0 0.0
    %399 = vmatpush1.msra.mxu0 0.0
    %400 = vmatprep.subr.mxu0 0.0
    %401 = vmatpush1.msra.mxu0 0.0
    %402 = vmatprep.mubr.f32.mxu0 0.0
    %403 = vmatmul.mubr.f32.gmra.mrb[0].mxu0 %v106
    %v404 = vpop.f32.mrb[0].mxu0
    %v405 = vadd.f32 0.0, %v404
    %v406 = vpop.f32.mrb[0].mxu0
    %407 = vmatprep.mubr.f32.mxu0 0.0
    %408 = vmatmul.mubr.f32.gmra.mrb[0].mxu0 %v107
    %v409 = vpop.f32.mrb[0].mxu0
    %v410 = vadd.f32 0.0, %v409
    %v411 = vpop.f32.mrb[0].mxu0
    %412 = vmatprep.mubr.f32.mxu0 0.0
    %413 = vmatmul.mubr.f32.gmra.mrb[0].mxu0 %v108
    %v414 = vpop.f32.mrb[0].mxu0
    %v415 = vadd.f32 0.0, %v414
    %v416 = vpop.f32.mrb[0].mxu0
    %417 = vmatprep.mubr.f32.mxu0 0.0
    %418 = vmatmul.mubr.f32.gmra.mrb[0].mxu0 %v109
    %v419 = vpop.f32.mrb[0].mxu0
    %v420 = vadd.f32 0.0, %v419
    %v421 = vpop.f32.mrb[0].mxu0
    %422 = vdwg.mxu0
    %s423 = scalar_lea.vmem [#allocation2], 32
    %v424 = vld [vmem:[%s423] sm:$0xff]
    %v425 = vld [vmem:[%s423 + $0x8] sm:$0xff]
    %v426 = vld [vmem:[%s423 + $0x10] sm:$0xff]
    %v427 = vld [vmem:[%s423 + $0x18] sm:$0xff]
    %v429 = vsel %vm219, %v424, 0
    %v432 = vsel %vm219, %v425, 0
    %v435 = vsel %vm219, %v426, 0
    %v438 = vsel %vm219, %v427, 0
    %440 = vmatprep.subr.mxu0 0.0
    %441 = vmatpush1.msra.mxu0 %v405
    %442 = vmatprep.subr.mxu0 0.0
    %443 = vmatpush1.msra.mxu0 %v410
    %444 = vmatprep.subr.mxu0 0.0
    %445 = vmatpush1.msra.mxu0 %v415
    %446 = vmatprep.subr.mxu0 0.0
    %447 = vmatpush1.msra.mxu0 %v420
    %448 = vmatprep.subr.mxu0 0.0
    %449 = vmatpush1.msra.mxu0 0.0
    %450 = vmatprep.subr.mxu0 0.0
    %451 = vmatpush1.msra.mxu0 0.0
    %452 = vmatprep.subr.mxu0 0.0
    %453 = vmatpush1.msra.mxu0 0.0
    %454 = vmatprep.subr.mxu0 0.0
    %455 = vmatpush1.msra.mxu0 0.0
    %456 = vmatprep.subr.mxu0 0.0
    %457 = vmatpush1.msra.mxu0 0.0
    %458 = vmatprep.subr.mxu0 0.0
    %459 = vmatpush1.msra.mxu0 0.0
    %460 = vmatprep.subr.mxu0 0.0
    %461 = vmatpush1.msra.mxu0 0.0
    %462 = vmatprep.subr.mxu0 0.0
    %463 = vmatpush1.msra.mxu0 0.0
    %464 = vmatprep.subr.mxu0 0.0
    %465 = vmatpush1.msra.mxu0 0.0
    %466 = vmatprep.subr.mxu0 0.0
    %467 = vmatpush1.msra.mxu0 0.0
    %468 = vmatprep.subr.mxu0 0.0
    %469 = vmatpush1.msra.mxu0 0.0
    %470 = vmatprep.subr.mxu0 0.0
    %471 = vmatpush1.msra.mxu0 0.0
    %472 = vmatprep.subr.mxu0 0.0
    %473 = vmatpush1.msra.mxu0 0.0
    %474 = vmatprep.subr.mxu0 0.0
    %475 = vmatpush1.msra.mxu0 0.0
    %476 = vmatprep.subr.mxu0 0.0
    %477 = vmatpush1.msra.mxu0 0.0
    %478 = vmatprep.subr.mxu0 0.0
    %479 = vmatpush1.msra.mxu0 0.0
    %480 = vmatprep.subr.mxu0 0.0
    %481 = vmatpush1.msra.mxu0 0.0
    %482 = vmatprep.subr.mxu0 0.0
    %483 = vmatpush1.msra.mxu0 0.0
    %484 = vmatprep.subr.mxu0 0.0
    %485 = vmatpush1.msra.mxu0 0.0
    %486 = vmatprep.subr.mxu0 0.0
    %487 = vmatpush1.msra.mxu0 0.0
    %488 = vmatprep.subr.mxu0 0.0
    %489 = vmatpush1.msra.mxu0 0.0
    %490 = vmatprep.subr.mxu0 0.0
    %491 = vmatpush1.msra.mxu0 0.0
    %492 = vmatprep.subr.mxu0 0.0
    %493 = vmatpush1.msra.mxu0 0.0
    %494 = vmatprep.subr.mxu0 0.0
    %495 = vmatpush1.msra.mxu0 0.0
    %496 = vmatprep.subr.mxu0 0.0
    %497 = vmatpush1.msra.mxu0 0.0
    %498 = vmatprep.subr.mxu0 0.0
    %499 = vmatpush1.msra.mxu0 0.0
    %500 = vmatprep.subr.mxu0 0.0
    %501 = vmatpush1.msra.mxu0 0.0
    %502 = vmatprep.subr.mxu0 0.0
    %503 = vmatpush1.msra.mxu0 0.0
    %504 = vmatprep.mubr.f32.mxu0 0.0
    %505 = vmatmul.mubr.f32.gmra.mrb[0].mxu0 %v429
    %v506 = vpop.f32.mrb[0].mxu0
    %v507 = vadd.f32 0.0, %v506
    %v508 = vpop.f32.mrb[0].mxu0
    %509 = vmatprep.mubr.f32.mxu0 0.0
    %510 = vmatmul.mubr.f32.gmra.mrb[0].mxu0 %v432
    %v511 = vpop.f32.mrb[0].mxu0
    %v512 = vadd.f32 0.0, %v511
    %v513 = vpop.f32.mrb[0].mxu0
    %514 = vmatprep.mubr.f32.mxu0 0.0
    %515 = vmatmul.mubr.f32.gmra.mrb[0].mxu0 %v435
    %v516 = vpop.f32.mrb[0].mxu0
    %v517 = vadd.f32 0.0, %v516
    %v518 = vpop.f32.mrb[0].mxu0
    %519 = vmatprep.mubr.f32.mxu0 0.0
    %520 = vmatmul.mubr.f32.gmra.mrb[0].mxu0 %v438
    %v521 = vpop.f32.mrb[0].mxu0
    %v522 = vadd.f32 0.0, %v521
    %v523 = vpop.f32.mrb[0].mxu0
    %524 = vdwg.mxu0
    %v525 = vadd.f32 %v317, %v507
    %v526 = vadd.f32 %v318, %v512
    %v527 = vadd.f32 %v319, %v517
    %v528 = vadd.f32 %v320, %v522
    %s529 = scalar_lea.vmem [#allocation7], 256
    %v530 = vld [vmem:[%s529] sm:$0xff]
    %v531 = vld [vmem:[%s529 + $0x8] sm:$0xff]
    %v532 = vld [vmem:[%s529 + $0x10] sm:$0xff]
    %v533 = vld [vmem:[%s529 + $0x18] sm:$0xff]
    %v534 = vld [vmem:[%s529 + $0x20] sm:$0xff]
    %v535 = vld [vmem:[%s529 + $0x28] sm:$0xff]
    %v536 = vld [vmem:[%s529 + $0x30] sm:$0xff]
    %v537 = vld [vmem:[%s529 + $0x38] sm:$0xff]
    %v538 = vld [vmem:[%s529 + $0x40] sm:$0xff]
    %v539 = vld [vmem:[%s529 + $0x48] sm:$0xff]
    %v540 = vld [vmem:[%s529 + $0x50] sm:$0xff]
    %v541 = vld [vmem:[%s529 + $0x58] sm:$0xff]
    %v542 = vld [vmem:[%s529 + $0x60] sm:$0xff]
    %v543 = vld [vmem:[%s529 + $0x68] sm:$0xff]
    %v544 = vld [vmem:[%s529 + $0x70] sm:$0xff]
    %v545 = vld [vmem:[%s529 + $0x78] sm:$0xff]
    %546 = vmatprep.subr.mxu0 0.0
    %547 = vmatpush1.msra.mxu0 %v530
    %548 = vmatprep.subr.mxu0 0.0
    %549 = vmatpush1.msra.mxu0 %v531
    %550 = vmatprep.subr.mxu0 0.0
    %551 = vmatpush1.msra.mxu0 %v532
    %552 = vmatprep.subr.mxu0 0.0
    %553 = vmatpush1.msra.mxu0 %v533
    %554 = vmatprep.subr.mxu0 0.0
    %555 = vmatpush1.msra.mxu0 %v534
    %556 = vmatprep.subr.mxu0 0.0
    %557 = vmatpush1.msra.mxu0 %v535
    %558 = vmatprep.subr.mxu0 0.0
    %559 = vmatpush1.msra.mxu0 %v536
    %560 = vmatprep.subr.mxu0 0.0
    %561 = vmatpush1.msra.mxu0 %v537
    %562 = vmatprep.subr.mxu0 0.0
    %563 = vmatpush1.msra.mxu0 %v538
    %564 = vmatprep.subr.mxu0 0.0
    %565 = vmatpush1.msra.mxu0 %v539
    %566 = vmatprep.subr.mxu0 0.0
    %567 = vmatpush1.msra.mxu0 %v540
    %568 = vmatprep.subr.mxu0 0.0
    %569 = vmatpush1.msra.mxu0 %v541
    %570 = vmatprep.subr.mxu0 0.0
    %571 = vmatpush1.msra.mxu0 %v542
    %572 = vmatprep.subr.mxu0 0.0
    %573 = vmatpush1.msra.mxu0 %v543
    %574 = vmatprep.subr.mxu0 0.0
    %575 = vmatpush1.msra.mxu0 %v544
    %576 = vmatprep.subr.mxu0 0.0
    %577 = vmatpush1.msra.mxu0 %v545
    %578 = vmatprep.subr.mxu0 0.0
    %579 = vmatpush1.msra.mxu0 0.0
    %580 = vmatprep.subr.mxu0 0.0
    %581 = vmatpush1.msra.mxu0 0.0
    %582 = vmatprep.subr.mxu0 0.0
    %583 = vmatpush1.msra.mxu0 0.0
    %584 = vmatprep.subr.mxu0 0.0
    %585 = vmatpush1.msra.mxu0 0.0
    %586 = vmatprep.subr.mxu0 0.0
    %587 = vmatpush1.msra.mxu0 0.0
    %588 = vmatprep.subr.mxu0 0.0
    %589 = vmatpush1.msra.mxu0 0.0
    %590 = vmatprep.subr.mxu0 0.0
    %591 = vmatpush1.msra.mxu0 0.0
    %592 = vmatprep.subr.mxu0 0.0
    %593 = vmatpush1.msra.mxu0 0.0
    %594 = vmatprep.subr.mxu0 0.0
    %595 = vmatpush1.msra.mxu0 0.0
    %596 = vmatprep.subr.mxu0 0.0
    %597 = vmatpush1.msra.mxu0 0.0
    %598 = vmatprep.subr.mxu0 0.0
    %599 = vmatpush1.msra.mxu0 0.0
    %600 = vmatprep.subr.mxu0 0.0
    %601 = vmatpush1.msra.mxu0 0.0
    %602 = vmatprep.subr.mxu0 0.0
    %603 = vmatpush1.msra.mxu0 0.0
    %604 = vmatprep.subr.mxu0 0.0
    %605 = vmatpush1.msra.mxu0 0.0
    %606 = vmatprep.subr.mxu0 0.0
    %607 = vmatpush1.msra.mxu0 0.0
    %608 = vmatprep.subr.mxu0 0.0
    %609 = vmatpush1.msra.mxu0 0.0
    %610 = vmatprep.mubr.f32.mxu0 0.0
    %611 = vmatmul.mubr.f32.gmra.mrb[0].mxu0 %v106
    %v612 = vpop.f32.mrb[0].mxu0
    %v613 = vadd.f32 0.0, %v612
    %v614 = vpop.f32.mrb[0].mxu0
    %615 = vmatprep.mubr.f32.mxu0 0.0
    %616 = vmatmul.mubr.f32.gmra.mrb[0].mxu0 %v107
    %v617 = vpop.f32.mrb[0].mxu0
    %v618 = vadd.f32 0.0, %v617
    %v619 = vpop.f32.mrb[0].mxu0
    %620 = vmatprep.mubr.f32.mxu0 0.0
    %621 = vmatmul.mubr.f32.gmra.mrb[0].mxu0 %v108
    %v622 = vpop.f32.mrb[0].mxu0
    %v623 = vadd.f32 0.0, %v622
    %v624 = vpop.f32.mrb[0].mxu0
    %625 = vmatprep.mubr.f32.mxu0 0.0
    %626 = vmatmul.mubr.f32.gmra.mrb[0].mxu0 %v109
    %v627 = vpop.f32.mrb[0].mxu0
    %v628 = vadd.f32 0.0, %v627
    %v629 = vpop.f32.mrb[0].mxu0
    %630 = vdwg.mxu0
    %s631 = scalar_lea.vmem [#allocation2], 64
    %v632 = vld [vmem:[%s631] sm:$0xff]
    %v633 = vld [vmem:[%s631 + $0x8] sm:$0xff]
    %v634 = vld [vmem:[%s631 + $0x10] sm:$0xff]
    %v635 = vld [vmem:[%s631 + $0x18] sm:$0xff]
    %v637 = vsel %vm219, %v632, 0
    %v640 = vsel %vm219, %v633, 0
    %v643 = vsel %vm219, %v634, 0
    %v646 = vsel %vm219, %v635, 0
    %648 = vmatprep.subr.mxu0 0.0
    %649 = vmatpush1.msra.mxu0 %v613
    %650 = vmatprep.subr.mxu0 0.0
    %651 = vmatpush1.msra.mxu0 %v618
    %652 = vmatprep.subr.mxu0 0.0
    %653 = vmatpush1.msra.mxu0 %v623
    %654 = vmatprep.subr.mxu0 0.0
    %655 = vmatpush1.msra.mxu0 %v628
    %656 = vmatprep.subr.mxu0 0.0
    %657 = vmatpush1.msra.mxu0 0.0
    %658 = vmatprep.subr.mxu0 0.0
    %659 = vmatpush1.msra.mxu0 0.0
    %660 = vmatprep.subr.mxu0 0.0
    %661 = vmatpush1.msra.mxu0 0.0
    %662 = vmatprep.subr.mxu0 0.0
    %663 = vmatpush1.msra.mxu0 0.0
    %664 = vmatprep.subr.mxu0 0.0
    %665 = vmatpush1.msra.mxu0 0.0
    %666 = vmatprep.subr.mxu0 0.0
    %667 = vmatpush1.msra.mxu0 0.0
    %668 = vmatprep.subr.mxu0 0.0
    %669 = vmatpush1.msra.mxu0 0.0
    %670 = vmatprep.subr.mxu0 0.0
    %671 = vmatpush1.msra.mxu0 0.0
    %672 = vmatprep.subr.mxu0 0.0
    %673 = vmatpush1.msra.mxu0 0.0
    %674 = vmatprep.subr.mxu0 0.0
    %675 = vmatpush1.msra.mxu0 0.0
    %676 = vmatprep.subr.mxu0 0.0
    %677 = vmatpush1.msra.mxu0 0.0
    %678 = vmatprep.subr.mxu0 0.0
    %679 = vmatpush1.msra.mxu0 0.0
    %680 = vmatprep.subr.mxu0 0.0
    %681 = vmatpush1.msra.mxu0 0.0
    %682 = vmatprep.subr.mxu0 0.0
    %683 = vmatpush1.msra.mxu0 0.0
    %684 = vmatprep.subr.mxu0 0.0
    %685 = vmatpush1.msra.mxu0 0.0
    %686 = vmatprep.subr.mxu0 0.0
    %687 = vmatpush1.msra.mxu0 0.0
    %688 = vmatprep.subr.mxu0 0.0
    %689 = vmatpush1.msra.mxu0 0.0
    %690 = vmatprep.subr.mxu0 0.0
    %691 = vmatpush1.msra.mxu0 0.0
    %692 = vmatprep.subr.mxu0 0.0
    %693 = vmatpush1.msra.mxu0 0.0
    %694 = vmatprep.subr.mxu0 0.0
    %695 = vmatpush1.msra.mxu0 0.0
    %696 = vmatprep.subr.mxu0 0.0
    %697 = vmatpush1.msra.mxu0 0.0
    %698 = vmatprep.subr.mxu0 0.0
    %699 = vmatpush1.msra.mxu0 0.0
    %700 = vmatprep.subr.mxu0 0.0
    %701 = vmatpush1.msra.mxu0 0.0
    %702 = vmatprep.subr.mxu0 0.0
    %703 = vmatpush1.msra.mxu0 0.0
    %704 = vmatprep.subr.mxu0 0.0
    %705 = vmatpush1.msra.mxu0 0.0
    %706 = vmatprep.subr.mxu0 0.0
    %707 = vmatpush1.msra.mxu0 0.0
    %708 = vmatprep.subr.mxu0 0.0
    %709 = vmatpush1.msra.mxu0 0.0
    %710 = vmatprep.subr.mxu0 0.0
    %711 = vmatpush1.msra.mxu0 0.0
    %712 = vmatprep.mubr.f32.mxu0 0.0
    %713 = vmatmul.mubr.f32.gmra.mrb[0].mxu0 %v637
    %v714 = vpop.f32.mrb[0].mxu0
    %v715 = vadd.f32 0.0, %v714
    %v716 = vpop.f32.mrb[0].mxu0
    %717 = vmatprep.mubr.f32.mxu0 0.0
    %718 = vmatmul.mubr.f32.gmra.mrb[0].mxu0 %v640
    %v719 = vpop.f32.mrb[0].mxu0
    %v720 = vadd.f32 0.0, %v719
    %v721 = vpop.f32.mrb[0].mxu0
    %722 = vmatprep.mubr.f32.mxu0 0.0
    %723 = vmatmul.mubr.f32.gmra.mrb[0].mxu0 %v643
    %v724 = vpop.f32.mrb[0].mxu0
    %v725 = vadd.f32 0.0, %v724
    %v726 = vpop.f32.mrb[0].mxu0
    %727 = vmatprep.mubr.f32.mxu0 0.0
    %728 = vmatmul.mubr.f32.gmra.mrb[0].mxu0 %v646
    %v729 = vpop.f32.mrb[0].mxu0
    %v730 = vadd.f32 0.0, %v729
    %v731 = vpop.f32.mrb[0].mxu0
    %732 = vdwg.mxu0
    %v733 = vadd.f32 %v525, %v715
    %v734 = vadd.f32 %v526, %v720
    %v735 = vadd.f32 %v527, %v725
    %v736 = vadd.f32 %v528, %v730
    %s737 = scalar_lea.vmem [#allocation7], 384
    %v738 = vld [vmem:[%s737] sm:$0xff]
    %v739 = vld [vmem:[%s737 + $0x8] sm:$0xff]
    %v740 = vld [vmem:[%s737 + $0x10] sm:$0xff]
    %v741 = vld [vmem:[%s737 + $0x18] sm:$0xff]
    %v742 = vld [vmem:[%s737 + $0x20] sm:$0xff]
    %v743 = vld [vmem:[%s737 + $0x28] sm:$0xff]
    %v744 = vld [vmem:[%s737 + $0x30] sm:$0xff]
    %v745 = vld [vmem:[%s737 + $0x38] sm:$0xff]
    %v746 = vld [vmem:[%s737 + $0x40] sm:$0xff]
    %v747 = vld [vmem:[%s737 + $0x48] sm:$0xff]
    %v748 = vld [vmem:[%s737 + $0x50] sm:$0xff]
    %v749 = vld [vmem:[%s737 + $0x58] sm:$0xff]
    %v750 = vld [vmem:[%s737 + $0x60] sm:$0xff]
    %v751 = vld [vmem:[%s737 + $0x68] sm:$0xff]
    %v752 = vld [vmem:[%s737 + $0x70] sm:$0xff]
    %v753 = vld [vmem:[%s737 + $0x78] sm:$0xff]
    %754 = vmatprep.subr.mxu0 0.0
    %755 = vmatpush1.msra.mxu0 %v738
    %756 = vmatprep.subr.mxu0 0.0
    %757 = vmatpush1.msra.mxu0 %v739
    %758 = vmatprep.subr.mxu0 0.0
    %759 = vmatpush1.msra.mxu0 %v740
    %760 = vmatprep.subr.mxu0 0.0
    %761 = vmatpush1.msra.mxu0 %v741
    %762 = vmatprep.subr.mxu0 0.0
    %763 = vmatpush1.msra.mxu0 %v742
    %764 = vmatprep.subr.mxu0 0.0
    %765 = vmatpush1.msra.mxu0 %v743
    %766 = vmatprep.subr.mxu0 0.0
    %767 = vmatpush1.msra.mxu0 %v744
    %768 = vmatprep.subr.mxu0 0.0
    %769 = vmatpush1.msra.mxu0 %v745
    %770 = vmatprep.subr.mxu0 0.0
    %771 = vmatpush1.msra.mxu0 %v746
    %772 = vmatprep.subr.mxu0 0.0
    %773 = vmatpush1.msra.mxu0 %v747
    %774 = vmatprep.subr.mxu0 0.0
    %775 = vmatpush1.msra.mxu0 %v748
    %776 = vmatprep.subr.mxu0 0.0
    %777 = vmatpush1.msra.mxu0 %v749
    %778 = vmatprep.subr.mxu0 0.0
    %779 = vmatpush1.msra.mxu0 %v750
    %780 = vmatprep.subr.mxu0 0.0
    %781 = vmatpush1.msra.mxu0 %v751
    %782 = vmatprep.subr.mxu0 0.0
    %783 = vmatpush1.msra.mxu0 %v752
    %784 = vmatprep.subr.mxu0 0.0
    %785 = vmatpush1.msra.mxu0 %v753
    %786 = vmatprep.subr.mxu0 0.0
    %787 = vmatpush1.msra.mxu0 0.0
    %788 = vmatprep.subr.mxu0 0.0
    %789 = vmatpush1.msra.mxu0 0.0
    %790 = vmatprep.subr.mxu0 0.0
    %791 = vmatpush1.msra.mxu0 0.0
    %792 = vmatprep.subr.mxu0 0.0
    %793 = vmatpush1.msra.mxu0 0.0
    %794 = vmatprep.subr.mxu0 0.0
    %795 = vmatpush1.msra.mxu0 0.0
    %796 = vmatprep.subr.mxu0 0.0
    %797 = vmatpush1.msra.mxu0 0.0
    %798 = vmatprep.subr.mxu0 0.0
    %799 = vmatpush1.msra.mxu0 0.0
    %800 = vmatprep.subr.mxu0 0.0
    %801 = vmatpush1.msra.mxu0 0.0
    %802 = vmatprep.subr.mxu0 0.0
    %803 = vmatpush1.msra.mxu0 0.0
    %804 = vmatprep.subr.mxu0 0.0
    %805 = vmatpush1.msra.mxu0 0.0
    %806 = vmatprep.subr.mxu0 0.0
    %807 = vmatpush1.msra.mxu0 0.0
    %808 = vmatprep.subr.mxu0 0.0
    %809 = vmatpush1.msra.mxu0 0.0
    %810 = vmatprep.subr.mxu0 0.0
    %811 = vmatpush1.msra.mxu0 0.0
    %812 = vmatprep.subr.mxu0 0.0
    %813 = vmatpush1.msra.mxu0 0.0
    %814 = vmatprep.subr.mxu0 0.0
    %815 = vmatpush1.msra.mxu0 0.0
    %816 = vmatprep.subr.mxu0 0.0
    %817 = vmatpush1.msra.mxu0 0.0
    %818 = vmatprep.mubr.f32.mxu0 0.0
    %819 = vmatmul.mubr.f32.gmra.mrb[0].mxu0 %v106
    %v820 = vpop.f32.mrb[0].mxu0
    %v821 = vadd.f32 0.0, %v820
    %v822 = vpop.f32.mrb[0].mxu0
    %823 = vmatprep.mubr.f32.mxu0 0.0
    %824 = vmatmul.mubr.f32.gmra.mrb[0].mxu0 %v107
    %v825 = vpop.f32.mrb[0].mxu0
    %v826 = vadd.f32 0.0, %v825
    %v827 = vpop.f32.mrb[0].mxu0
    %828 = vmatprep.mubr.f32.mxu0 0.0
    %829 = vmatmul.mubr.f32.gmra.mrb[0].mxu0 %v108
    %v830 = vpop.f32.mrb[0].mxu0
    %v831 = vadd.f32 0.0, %v830
    %v832 = vpop.f32.mrb[0].mxu0
    %833 = vmatprep.mubr.f32.mxu0 0.0
    %834 = vmatmul.mubr.f32.gmra.mrb[0].mxu0 %v109
    %v835 = vpop.f32.mrb[0].mxu0
    %v836 = vadd.f32 0.0, %v835
    %v837 = vpop.f32.mrb[0].mxu0
    %838 = vdwg.mxu0
    %s839 = scalar_lea.vmem [#allocation2], 96
    %v840 = vld [vmem:[%s839] sm:$0xff]
    %v841 = vld [vmem:[%s839 + $0x8] sm:$0xff]
    %v842 = vld [vmem:[%s839 + $0x10] sm:$0xff]
    %v843 = vld [vmem:[%s839 + $0x18] sm:$0xff]
    %v845 = vsel %vm219, %v840, 0
    %v848 = vsel %vm219, %v841, 0
    %v851 = vsel %vm219, %v842, 0
    %v854 = vsel %vm219, %v843, 0
    %856 = vmatprep.subr.mxu0 0.0
    %857 = vmatpush1.msra.mxu0 %v821
    %858 = vmatprep.subr.mxu0 0.0
    %859 = vmatpush1.msra.mxu0 %v826
    %860 = vmatprep.subr.mxu0 0.0
    %861 = vmatpush1.msra.mxu0 %v831
    %862 = vmatprep.subr.mxu0 0.0
    %863 = vmatpush1.msra.mxu0 %v836
    %864 = vmatprep.subr.mxu0 0.0
    %865 = vmatpush1.msra.mxu0 0.0
    %866 = vmatprep.subr.mxu0 0.0
    %867 = vmatpush1.msra.mxu0 0.0
    %868 = vmatprep.subr.mxu0 0.0
    %869 = vmatpush1.msra.mxu0 0.0
    %870 = vmatprep.subr.mxu0 0.0
    %871 = vmatpush1.msra.mxu0 0.0
    %872 = vmatprep.subr.mxu0 0.0
    %873 = vmatpush1.msra.mxu0 0.0
    %874 = vmatprep.subr.mxu0 0.0
    %875 = vmatpush1.msra.mxu0 0.0
    %876 = vmatprep.subr.mxu0 0.0
    %877 = vmatpush1.msra.mxu0 0.0
    %878 = vmatprep.subr.mxu0 0.0
    %879 = vmatpush1.msra.mxu0 0.0
    %880 = vmatprep.subr.mxu0 0.0
    %881 = vmatpush1.msra.mxu0 0.0
    %882 = vmatprep.subr.mxu0 0.0
    %883 = vmatpush1.msra.mxu0 0.0
    %884 = vmatprep.subr.mxu0 0.0
    %885 = vmatpush1.msra.mxu0 0.0
    %886 = vmatprep.subr.mxu0 0.0
    %887 = vmatpush1.msra.mxu0 0.0
    %888 = vmatprep.subr.mxu0 0.0
    %889 = vmatpush1.msra.mxu0 0.0
    %890 = vmatprep.subr.mxu0 0.0
    %891 = vmatpush1.msra.mxu0 0.0
    %892 = vmatprep.subr.mxu0 0.0
    %893 = vmatpush1.msra.mxu0 0.0
    %894 = vmatprep.subr.mxu0 0.0
    %895 = vmatpush1.msra.mxu0 0.0
    %896 = vmatprep.subr.mxu0 0.0
    %897 = vmatpush1.msra.mxu0 0.0
    %898 = vmatprep.subr.mxu0 0.0
    %899 = vmatpush1.msra.mxu0 0.0
    %900 = vmatprep.subr.mxu0 0.0
    %901 = vmatpush1.msra.mxu0 0.0
    %902 = vmatprep.subr.mxu0 0.0
    %903 = vmatpush1.msra.mxu0 0.0
    %904 = vmatprep.subr.mxu0 0.0
    %905 = vmatpush1.msra.mxu0 0.0
    %906 = vmatprep.subr.mxu0 0.0
    %907 = vmatpush1.msra.mxu0 0.0
    %908 = vmatprep.subr.mxu0 0.0
    %909 = vmatpush1.msra.mxu0 0.0
    %910 = vmatprep.subr.mxu0 0.0
    %911 = vmatpush1.msra.mxu0 0.0
    %912 = vmatprep.subr.mxu0 0.0
    %913 = vmatpush1.msra.mxu0 0.0
    %914 = vmatprep.subr.mxu0 0.0
    %915 = vmatpush1.msra.mxu0 0.0
    %916 = vmatprep.subr.mxu0 0.0
    %917 = vmatpush1.msra.mxu0 0.0
    %918 = vmatprep.subr.mxu0 0.0
    %919 = vmatpush1.msra.mxu0 0.0
    %920 = vmatprep.mubr.f32.mxu0 0.0
    %921 = vmatmul.mubr.f32.gmra.mrb[0].mxu0 %v845
    %v922 = vpop.f32.mrb[0].mxu0
    %v923 = vadd.f32 0.0, %v922
    %v924 = vpop.f32.mrb[0].mxu0
    %925 = vmatprep.mubr.f32.mxu0 0.0
    %926 = vmatmul.mubr.f32.gmra.mrb[0].mxu0 %v848
    %v927 = vpop.f32.mrb[0].mxu0
    %v928 = vadd.f32 0.0, %v927
    %v929 = vpop.f32.mrb[0].mxu0
    %930 = vmatprep.mubr.f32.mxu0 0.0
    %931 = vmatmul.mubr.f32.gmra.mrb[0].mxu0 %v851
    %v932 = vpop.f32.mrb[0].mxu0
    %v933 = vadd.f32 0.0, %v932
    %v934 = vpop.f32.mrb[0].mxu0
    %935 = vmatprep.mubr.f32.mxu0 0.0
    %936 = vmatmul.mubr.f32.gmra.mrb[0].mxu0 %v854
    %v937 = vpop.f32.mrb[0].mxu0
    %v938 = vadd.f32 0.0, %v937
    %v939 = vpop.f32.mrb[0].mxu0
    %940 = vdwg.mxu0
    %v941 = vadd.f32 %v733, %v923
    %v942 = vadd.f32 %v734, %v928
    %v943 = vadd.f32 %v735, %v933
    %v944 = vadd.f32 %v736, %v938
    %vm945 = vcmp.gt.f32.partialorder %v941, 0.0
    %vm946 = vcmp.gt.f32.partialorder %v942, 0.0
    %vm947 = vcmp.gt.f32.partialorder %v943, 0.0
    %vm948 = vcmp.gt.f32.partialorder %v944, 0.0
    %v949 = vmul.f32 %v941, 0.01
    %v950 = vmul.f32 %v942, 0.01
    %v951 = vmul.f32 %v943, 0.01
    %v952 = vmul.f32 %v944, 0.01
    %v953 = vsel %vm945, %v941, %v949
    %v954 = vsel %vm946, %v942, %v950
    %v955 = vsel %vm947, %v943, %v951
    %v956 = vsel %vm948, %v944, %v952
    %v957 = vld [vmem:[#allocation11] sm:$0xff]
    %v958 = vld [vmem:[#allocation11 + $0x8] sm:$0xff]
    %v959 = vld [vmem:[#allocation11 + $0x10] sm:$0xff]
    %v960 = vld [vmem:[#allocation11 + $0x18] sm:$0xff]
    %v961 = vld [vmem:[#allocation10] sm:$0xff]
    %v962 = vld [vmem:[#allocation10 + $0x8] sm:$0xff]
    %v963 = vld [vmem:[#allocation10 + $0x10] sm:$0xff]
    %v964 = vld [vmem:[#allocation10 + $0x18] sm:$0xff]
    %v965 = vld [vmem:[#allocation10 + $0x20] sm:$0xff]
    %v966 = vld [vmem:[#allocation10 + $0x28] sm:$0xff]
    %v967 = vld [vmem:[#allocation10 + $0x30] sm:$0xff]
    %v968 = vld [vmem:[#allocation10 + $0x38] sm:$0xff]
    %v969 = vld [vmem:[#allocation10 + $0x40] sm:$0xff]
    %v970 = vld [vmem:[#allocation10 + $0x48] sm:$0xff]
    %v971 = vld [vmem:[#allocation10 + $0x50] sm:$0xff]
    %v972 = vld [vmem:[#allocation10 + $0x58] sm:$0xff]
    %v973 = vld [vmem:[#allocation10 + $0x60] sm:$0xff]
    %v974 = vld [vmem:[#allocation10 + $0x68] sm:$0xff]
    %v975 = vld [vmem:[#allocation10 + $0x70] sm:$0xff]
    %v976 = vld [vmem:[#allocation10 + $0x78] sm:$0xff]
    %977 = vmatprep.subr.mxu0 0.0
    %978 = vmatpush1.msra.mxu0 %v961
    %979 = vmatprep.subr.mxu0 0.0
    %980 = vmatpush1.msra.mxu0 %v962
    %981 = vmatprep.subr.mxu0 0.0
    %982 = vmatpush1.msra.mxu0 %v963
    %983 = vmatprep.subr.mxu0 0.0
    %984 = vmatpush1.msra.mxu0 %v964
    %985 = vmatprep.subr.mxu0 0.0
    %986 = vmatpush1.msra.mxu0 %v965
    %987 = vmatprep.subr.mxu0 0.0
    %988 = vmatpush1.msra.mxu0 %v966
    %989 = vmatprep.subr.mxu0 0.0
    %990 = vmatpush1.msra.mxu0 %v967
    %991 = vmatprep.subr.mxu0 0.0
    %992 = vmatpush1.msra.mxu0 %v968
    %993 = vmatprep.subr.mxu0 0.0
    %994 = vmatpush1.msra.mxu0 %v969
    %995 = vmatprep.subr.mxu0 0.0
    %996 = vmatpush1.msra.mxu0 %v970
    %997 = vmatprep.subr.mxu0 0.0
    %998 = vmatpush1.msra.mxu0 %v971
    %999 = vmatprep.subr.mxu0 0.0
    %1000 = vmatpush1.msra.mxu0 %v972
    %1001 = vmatprep.subr.mxu0 0.0
    %1002 = vmatpush1.msra.mxu0 %v973
    %1003 = vmatprep.subr.mxu0 0.0
    %1004 = vmatpush1.msra.mxu0 %v974
    %1005 = vmatprep.subr.mxu0 0.0
    %1006 = vmatpush1.msra.mxu0 %v975
    %1007 = vmatprep.subr.mxu0 0.0
    %1008 = vmatpush1.msra.mxu0 %v976
    %1009 = vmatprep.subr.mxu0 0.0
    %1010 = vmatpush1.msra.mxu0 0.0
    %1011 = vmatprep.subr.mxu0 0.0
    %1012 = vmatpush1.msra.mxu0 0.0
    %1013 = vmatprep.subr.mxu0 0.0
    %1014 = vmatpush1.msra.mxu0 0.0
    %1015 = vmatprep.subr.mxu0 0.0
    %1016 = vmatpush1.msra.mxu0 0.0
    %1017 = vmatprep.subr.mxu0 0.0
    %1018 = vmatpush1.msra.mxu0 0.0
    %1019 = vmatprep.subr.mxu0 0.0
    %1020 = vmatpush1.msra.mxu0 0.0
    %1021 = vmatprep.subr.mxu0 0.0
    %1022 = vmatpush1.msra.mxu0 0.0
    %1023 = vmatprep.subr.mxu0 0.0
    %1024 = vmatpush1.msra.mxu0 0.0
    %1025 = vmatprep.subr.mxu0 0.0
    %1026 = vmatpush1.msra.mxu0 0.0
    %1027 = vmatprep.subr.mxu0 0.0
    %1028 = vmatpush1.msra.mxu0 0.0
    %1029 = vmatprep.subr.mxu0 0.0
    %1030 = vmatpush1.msra.mxu0 0.0
    %1031 = vmatprep.subr.mxu0 0.0
    %1032 = vmatpush1.msra.mxu0 0.0
    %1033 = vmatprep.subr.mxu0 0.0
    %1034 = vmatpush1.msra.mxu0 0.0
    %1035 = vmatprep.subr.mxu0 0.0
    %1036 = vmatpush1.msra.mxu0 0.0
    %1037 = vmatprep.subr.mxu0 0.0
    %1038 = vmatpush1.msra.mxu0 0.0
    %1039 = vmatprep.subr.mxu0 0.0
    %1040 = vmatpush1.msra.mxu0 0.0
    %1041 = vmatprep.mubr.f32.mxu0 0.0
    %1042 = vmatmul.mubr.f32.gmra.mrb[0].mxu0 %v953
    %v1043 = vpop.f32.mrb[0].mxu0
    %v1044 = vadd.f32 0.0, %v1043
    %v1045 = vpop.f32.mrb[0].mxu0
    %1046 = vmatprep.mubr.f32.mxu0 0.0
    %1047 = vmatmul.mubr.f32.gmra.mrb[0].mxu0 %v954
    %v1048 = vpop.f32.mrb[0].mxu0
    %v1049 = vadd.f32 0.0, %v1048
    %v1050 = vpop.f32.mrb[0].mxu0
    %1051 = vmatprep.mubr.f32.mxu0 0.0
    %1052 = vmatmul.mubr.f32.gmra.mrb[0].mxu0 %v955
    %v1053 = vpop.f32.mrb[0].mxu0
    %v1054 = vadd.f32 0.0, %v1053
    %v1055 = vpop.f32.mrb[0].mxu0
    %1056 = vmatprep.mubr.f32.mxu0 0.0
    %1057 = vmatmul.mubr.f32.gmra.mrb[0].mxu0 %v956
    %v1058 = vpop.f32.mrb[0].mxu0
    %v1059 = vadd.f32 0.0, %v1058
    %v1060 = vpop.f32.mrb[0].mxu0
    %1061 = vdwg.mxu0
    %1062 = vmatprep.subr.mxu0 0.0
    %1063 = vmatpush1.msra.mxu0 %v1044
    %1064 = vmatprep.subr.mxu0 0.0
    %1065 = vmatpush1.msra.mxu0 %v1049
    %1066 = vmatprep.subr.mxu0 0.0
    %1067 = vmatpush1.msra.mxu0 %v1054
    %1068 = vmatprep.subr.mxu0 0.0
    %1069 = vmatpush1.msra.mxu0 %v1059
    %1070 = vmatprep.subr.mxu0 0.0
    %1071 = vmatpush1.msra.mxu0 0.0
    %1072 = vmatprep.subr.mxu0 0.0
    %1073 = vmatpush1.msra.mxu0 0.0
    %1074 = vmatprep.subr.mxu0 0.0
    %1075 = vmatpush1.msra.mxu0 0.0
    %1076 = vmatprep.subr.mxu0 0.0
    %1077 = vmatpush1.msra.mxu0 0.0
    %1078 = vmatprep.subr.mxu0 0.0
    %1079 = vmatpush1.msra.mxu0 0.0
    %1080 = vmatprep.subr.mxu0 0.0
    %1081 = vmatpush1.msra.mxu0 0.0
    %1082 = vmatprep.subr.mxu0 0.0
    %1083 = vmatpush1.msra.mxu0 0.0
    %1084 = vmatprep.subr.mxu0 0.0
    %1085 = vmatpush1.msra.mxu0 0.0
    %1086 = vmatprep.subr.mxu0 0.0
    %1087 = vmatpush1.msra.mxu0 0.0
    %1088 = vmatprep.subr.mxu0 0.0
    %1089 = vmatpush1.msra.mxu0 0.0
    %1090 = vmatprep.subr.mxu0 0.0
    %1091 = vmatpush1.msra.mxu0 0.0
    %1092 = vmatprep.subr.mxu0 0.0
    %1093 = vmatpush1.msra.mxu0 0.0
    %1094 = vmatprep.subr.mxu0 0.0
    %1095 = vmatpush1.msra.mxu0 0.0
    %1096 = vmatprep.subr.mxu0 0.0
    %1097 = vmatpush1.msra.mxu0 0.0
    %1098 = vmatprep.subr.mxu0 0.0
    %1099 = vmatpush1.msra.mxu0 0.0
    %1100 = vmatprep.subr.mxu0 0.0
    %1101 = vmatpush1.msra.mxu0 0.0
    %1102 = vmatprep.subr.mxu0 0.0
    %1103 = vmatpush1.msra.mxu0 0.0
    %1104 = vmatprep.subr.mxu0 0.0
    %1105 = vmatpush1.msra.mxu0 0.0
    %1106 = vmatprep.subr.mxu0 0.0
    %1107 = vmatpush1.msra.mxu0 0.0
    %1108 = vmatprep.subr.mxu0 0.0
    %1109 = vmatpush1.msra.mxu0 0.0
    %1110 = vmatprep.subr.mxu0 0.0
    %1111 = vmatpush1.msra.mxu0 0.0
    %1112 = vmatprep.subr.mxu0 0.0
    %1113 = vmatpush1.msra.mxu0 0.0
    %1114 = vmatprep.subr.mxu0 0.0
    %1115 = vmatpush1.msra.mxu0 0.0
    %1116 = vmatprep.subr.mxu0 0.0
    %1117 = vmatpush1.msra.mxu0 0.0
    %1118 = vmatprep.subr.mxu0 0.0
    %1119 = vmatpush1.msra.mxu0 0.0
    %1120 = vmatprep.subr.mxu0 0.0
    %1121 = vmatpush1.msra.mxu0 0.0
    %1122 = vmatprep.subr.mxu0 0.0
    %1123 = vmatpush1.msra.mxu0 0.0
    %1124 = vmatprep.subr.mxu0 0.0
    %1125 = vmatpush1.msra.mxu0 0.0
    %1126 = vmatprep.mubr.f32.mxu0 0.0
    %1127 = vmatmul.mubr.f32.gmra.mrb[0].mxu0 %v221
    %v1128 = vpop.f32.mrb[0].mxu0
    %v1129 = vadd.f32 0.0, %v1128
    %v1130 = vpop.f32.mrb[0].mxu0
    %1131 = vmatprep.mubr.f32.mxu0 0.0
    %1132 = vmatmul.mubr.f32.gmra.mrb[0].mxu0 %v224
    %v1133 = vpop.f32.mrb[0].mxu0
    %v1134 = vadd.f32 0.0, %v1133
    %v1135 = vpop.f32.mrb[0].mxu0
    %1136 = vmatprep.mubr.f32.mxu0 0.0
    %1137 = vmatmul.mubr.f32.gmra.mrb[0].mxu0 %v227
    %v1138 = vpop.f32.mrb[0].mxu0
    %v1139 = vadd.f32 0.0, %v1138
    %v1140 = vpop.f32.mrb[0].mxu0
    %1141 = vmatprep.mubr.f32.mxu0 0.0
    %1142 = vmatmul.mubr.f32.gmra.mrb[0].mxu0 %v230
    %v1143 = vpop.f32.mrb[0].mxu0
    %v1144 = vadd.f32 0.0, %v1143
    %v1145 = vpop.f32.mrb[0].mxu0
    %1146 = vdwg.mxu0
    %v1147 = vadd.f32 %v957, %v1129
    %v1148 = vadd.f32 %v958, %v1134
    %v1149 = vadd.f32 %v959, %v1139
    %v1150 = vadd.f32 %v960, %v1144
    %s1151 = scalar_lea.vmem [#allocation10], 128
    %v1152 = vld [vmem:[%s1151] sm:$0xff]
    %v1153 = vld [vmem:[%s1151 + $0x8] sm:$0xff]
    %v1154 = vld [vmem:[%s1151 + $0x10] sm:$0xff]
    %v1155 = vld [vmem:[%s1151 + $0x18] sm:$0xff]
    %v1156 = vld [vmem:[%s1151 + $0x20] sm:$0xff]
    %v1157 = vld [vmem:[%s1151 + $0x28] sm:$0xff]
    %v1158 = vld [vmem:[%s1151 + $0x30] sm:$0xff]
    %v1159 = vld [vmem:[%s1151 + $0x38] sm:$0xff]
    %v1160 = vld [vmem:[%s1151 + $0x40] sm:$0xff]
    %v1161 = vld [vmem:[%s1151 + $0x48] sm:$0xff]
    %v1162 = vld [vmem:[%s1151 + $0x50] sm:$0xff]
    %v1163 = vld [vmem:[%s1151 + $0x58] sm:$0xff]
    %v1164 = vld [vmem:[%s1151 + $0x60] sm:$0xff]
    %v1165 = vld [vmem:[%s1151 + $0x68] sm:$0xff]
    %v1166 = vld [vmem:[%s1151 + $0x70] sm:$0xff]
    %v1167 = vld [vmem:[%s1151 + $0x78] sm:$0xff]
    %1168 = vmatprep.subr.mxu0 0.0
    %1169 = vmatpush1.msra.mxu0 %v1152
    %1170 = vmatprep.subr.mxu0 0.0
    %1171 = vmatpush1.msra.mxu0 %v1153
    %1172 = vmatprep.subr.mxu0 0.0
    %1173 = vmatpush1.msra.mxu0 %v1154
    %1174 = vmatprep.subr.mxu0 0.0
    %1175 = vmatpush1.msra.mxu0 %v1155
    %1176 = vmatprep.subr.mxu0 0.0
    %1177 = vmatpush1.msra.mxu0 %v1156
    %1178 = vmatprep.subr.mxu0 0.0
    %1179 = vmatpush1.msra.mxu0 %v1157
    %1180 = vmatprep.subr.mxu0 0.0
    %1181 = vmatpush1.msra.mxu0 %v1158
    %1182 = vmatprep.subr.mxu0 0.0
    %1183 = vmatpush1.msra.mxu0 %v1159
    %1184 = vmatprep.subr.mxu0 0.0
    %1185 = vmatpush1.msra.mxu0 %v1160
    %1186 = vmatprep.subr.mxu0 0.0
    %1187 = vmatpush1.msra.mxu0 %v1161
    %1188 = vmatprep.subr.mxu0 0.0
    %1189 = vmatpush1.msra.mxu0 %v1162
    %1190 = vmatprep.subr.mxu0 0.0
    %1191 = vmatpush1.msra.mxu0 %v1163
    %1192 = vmatprep.subr.mxu0 0.0
    %1193 = vmatpush1.msra.mxu0 %v1164
    %1194 = vmatprep.subr.mxu0 0.0
    %1195 = vmatpush1.msra.mxu0 %v1165
    %1196 = vmatprep.subr.mxu0 0.0
    %1197 = vmatpush1.msra.mxu0 %v1166
    %1198 = vmatprep.subr.mxu0 0.0
    %1199 = vmatpush1.msra.mxu0 %v1167
    %1200 = vmatprep.subr.mxu0 0.0
    %1201 = vmatpush1.msra.mxu0 0.0
    %1202 = vmatprep.subr.mxu0 0.0
    %1203 = vmatpush1.msra.mxu0 0.0
    %1204 = vmatprep.subr.mxu0 0.0
    %1205 = vmatpush1.msra.mxu0 0.0
    %1206 = vmatprep.subr.mxu0 0.0
    %1207 = vmatpush1.msra.mxu0 0.0
    %1208 = vmatprep.subr.mxu0 0.0
    %1209 = vmatpush1.msra.mxu0 0.0
    %1210 = vmatprep.subr.mxu0 0.0
    %1211 = vmatpush1.msra.mxu0 0.0
    %1212 = vmatprep.subr.mxu0 0.0
    %1213 = vmatpush1.msra.mxu0 0.0
    %1214 = vmatprep.subr.mxu0 0.0
    %1215 = vmatpush1.msra.mxu0 0.0
    %1216 = vmatprep.subr.mxu0 0.0
    %1217 = vmatpush1.msra.mxu0 0.0
    %1218 = vmatprep.subr.mxu0 0.0
    %1219 = vmatpush1.msra.mxu0 0.0
    %1220 = vmatprep.subr.mxu0 0.0
    %1221 = vmatpush1.msra.mxu0 0.0
    %1222 = vmatprep.subr.mxu0 0.0
    %1223 = vmatpush1.msra.mxu0 0.0
    %1224 = vmatprep.subr.mxu0 0.0
    %1225 = vmatpush1.msra.mxu0 0.0
    %1226 = vmatprep.subr.mxu0 0.0
    %1227 = vmatpush1.msra.mxu0 0.0
    %1228 = vmatprep.subr.mxu0 0.0
    %1229 = vmatpush1.msra.mxu0 0.0
    %1230 = vmatprep.subr.mxu0 0.0
    %1231 = vmatpush1.msra.mxu0 0.0
    %1232 = vmatprep.mubr.f32.mxu0 0.0
    %1233 = vmatmul.mubr.f32.gmra.mrb[0].mxu0 %v953
    %v1234 = vpop.f32.mrb[0].mxu0
    %v1235 = vadd.f32 0.0, %v1234
    %v1236 = vpop.f32.mrb[0].mxu0
    %1237 = vmatprep.mubr.f32.mxu0 0.0
    %1238 = vmatmul.mubr.f32.gmra.mrb[0].mxu0 %v954
    %v1239 = vpop.f32.mrb[0].mxu0
    %v1240 = vadd.f32 0.0, %v1239
    %v1241 = vpop.f32.mrb[0].mxu0
    %1242 = vmatprep.mubr.f32.mxu0 0.0
    %1243 = vmatmul.mubr.f32.gmra.mrb[0].mxu0 %v955
    %v1244 = vpop.f32.mrb[0].mxu0
    %v1245 = vadd.f32 0.0, %v1244
    %v1246 = vpop.f32.mrb[0].mxu0
    %1247 = vmatprep.mubr.f32.mxu0 0.0
    %1248 = vmatmul.mubr.f32.gmra.mrb[0].mxu0 %v956
    %v1249 = vpop.f32.mrb[0].mxu0
    %v1250 = vadd.f32 0.0, %v1249
    %v1251 = vpop.f32.mrb[0].mxu0
    %1252 = vdwg.mxu0
    %1253 = vmatprep.subr.mxu0 0.0
    %1254 = vmatpush1.msra.mxu0 %v1235
    %1255 = vmatprep.subr.mxu0 0.0
    %1256 = vmatpush1.msra.mxu0 %v1240
    %1257 = vmatprep.subr.mxu0 0.0
    %1258 = vmatpush1.msra.mxu0 %v1245
    %1259 = vmatprep.subr.mxu0 0.0
    %1260 = vmatpush1.msra.mxu0 %v1250
    %1261 = vmatprep.subr.mxu0 0.0
    %1262 = vmatpush1.msra.mxu0 0.0
    %1263 = vmatprep.subr.mxu0 0.0
    %1264 = vmatpush1.msra.mxu0 0.0
    %1265 = vmatprep.subr.mxu0 0.0
    %1266 = vmatpush1.msra.mxu0 0.0
    %1267 = vmatprep.subr.mxu0 0.0
    %1268 = vmatpush1.msra.mxu0 0.0
    %1269 = vmatprep.subr.mxu0 0.0
    %1270 = vmatpush1.msra.mxu0 0.0
    %1271 = vmatprep.subr.mxu0 0.0
    %1272 = vmatpush1.msra.mxu0 0.0
    %1273 = vmatprep.subr.mxu0 0.0
    %1274 = vmatpush1.msra.mxu0 0.0
    %1275 = vmatprep.subr.mxu0 0.0
    %1276 = vmatpush1.msra.mxu0 0.0
    %1277 = vmatprep.subr.mxu0 0.0
    %1278 = vmatpush1.msra.mxu0 0.0
    %1279 = vmatprep.subr.mxu0 0.0
    %1280 = vmatpush1.msra.mxu0 0.0
    %1281 = vmatprep.subr.mxu0 0.0
    %1282 = vmatpush1.msra.mxu0 0.0
    %1283 = vmatprep.subr.mxu0 0.0
    %1284 = vmatpush1.msra.mxu0 0.0
    %1285 = vmatprep.subr.mxu0 0.0
    %1286 = vmatpush1.msra.mxu0 0.0
    %1287 = vmatprep.subr.mxu0 0.0
    %1288 = vmatpush1.msra.mxu0 0.0
    %1289 = vmatprep.subr.mxu0 0.0
    %1290 = vmatpush1.msra.mxu0 0.0
    %1291 = vmatprep.subr.mxu0 0.0
    %1292 = vmatpush1.msra.mxu0 0.0
    %1293 = vmatprep.subr.mxu0 0.0
    %1294 = vmatpush1.msra.mxu0 0.0
    %1295 = vmatprep.subr.mxu0 0.0
    %1296 = vmatpush1.msra.mxu0 0.0
    %1297 = vmatprep.subr.mxu0 0.0
    %1298 = vmatpush1.msra.mxu0 0.0
    %1299 = vmatprep.subr.mxu0 0.0
    %1300 = vmatpush1.msra.mxu0 0.0
    %1301 = vmatprep.subr.mxu0 0.0
    %1302 = vmatpush1.msra.mxu0 0.0
    %1303 = vmatprep.subr.mxu0 0.0
    %1304 = vmatpush1.msra.mxu0 0.0
    %1305 = vmatprep.subr.mxu0 0.0
    %1306 = vmatpush1.msra.mxu0 0.0
    %1307 = vmatprep.subr.mxu0 0.0
    %1308 = vmatpush1.msra.mxu0 0.0
    %1309 = vmatprep.subr.mxu0 0.0
    %1310 = vmatpush1.msra.mxu0 0.0
    %1311 = vmatprep.subr.mxu0 0.0
    %1312 = vmatpush1.msra.mxu0 0.0
    %1313 = vmatprep.subr.mxu0 0.0
    %1314 = vmatpush1.msra.mxu0 0.0
    %1315 = vmatprep.subr.mxu0 0.0
    %1316 = vmatpush1.msra.mxu0 0.0
    %1317 = vmatprep.mubr.f32.mxu0 0.0
    %1318 = vmatmul.mubr.f32.gmra.mrb[0].mxu0 %v429
    %v1319 = vpop.f32.mrb[0].mxu0
    %v1320 = vadd.f32 0.0, %v1319
    %v1321 = vpop.f32.mrb[0].mxu0
    %1322 = vmatprep.mubr.f32.mxu0 0.0
    %1323 = vmatmul.mubr.f32.gmra.mrb[0].mxu0 %v432
    %v1324 = vpop.f32.mrb[0].mxu0
    %v1325 = vadd.f32 0.0, %v1324
    %v1326 = vpop.f32.mrb[0].mxu0
    %1327 = vmatprep.mubr.f32.mxu0 0.0
    %1328 = vmatmul.mubr.f32.gmra.mrb[0].mxu0 %v435
    %v1329 = vpop.f32.mrb[0].mxu0
    %v1330 = vadd.f32 0.0, %v1329
    %v1331 = vpop.f32.mrb[0].mxu0
    %1332 = vmatprep.mubr.f32.mxu0 0.0
    %1333 = vmatmul.mubr.f32.gmra.mrb[0].mxu0 %v438
    %v1334 = vpop.f32.mrb[0].mxu0
    %v1335 = vadd.f32 0.0, %v1334
    %v1336 = vpop.f32.mrb[0].mxu0
    %1337 = vdwg.mxu0
    %v1338 = vadd.f32 %v1147, %v1320
    %v1339 = vadd.f32 %v1148, %v1325
    %v1340 = vadd.f32 %v1149, %v1330
    %v1341 = vadd.f32 %v1150, %v1335
    %s1342 = scalar_lea.vmem [#allocation10], 256
    %v1343 = vld [vmem:[%s1342] sm:$0xff]
    %v1344 = vld [vmem:[%s1342 + $0x8] sm:$0xff]
    %v1345 = vld [vmem:[%s1342 + $0x10] sm:$0xff]
    %v1346 = vld [vmem:[%s1342 + $0x18] sm:$0xff]
    %v1347 = vld [vmem:[%s1342 + $0x20] sm:$0xff]
    %v1348 = vld [vmem:[%s1342 + $0x28] sm:$0xff]
    %v1349 = vld [vmem:[%s1342 + $0x30] sm:$0xff]
    %v1350 = vld [vmem:[%s1342 + $0x38] sm:$0xff]
    %v1351 = vld [vmem:[%s1342 + $0x40] sm:$0xff]
    %v1352 = vld [vmem:[%s1342 + $0x48] sm:$0xff]
    %v1353 = vld [vmem:[%s1342 + $0x50] sm:$0xff]
    %v1354 = vld [vmem:[%s1342 + $0x58] sm:$0xff]
    %v1355 = vld [vmem:[%s1342 + $0x60] sm:$0xff]
    %v1356 = vld [vmem:[%s1342 + $0x68] sm:$0xff]
    %v1357 = vld [vmem:[%s1342 + $0x70] sm:$0xff]
    %v1358 = vld [vmem:[%s1342 + $0x78] sm:$0xff]
    %1359 = vmatprep.subr.mxu0 0.0
    %1360 = vmatpush1.msra.mxu0 %v1343
    %1361 = vmatprep.subr.mxu0 0.0
    %1362 = vmatpush1.msra.mxu0 %v1344
    %1363 = vmatprep.subr.mxu0 0.0
    %1364 = vmatpush1.msra.mxu0 %v1345
    %1365 = vmatprep.subr.mxu0 0.0
    %1366 = vmatpush1.msra.mxu0 %v1346
    %1367 = vmatprep.subr.mxu0 0.0
    %1368 = vmatpush1.msra.mxu0 %v1347
    %1369 = vmatprep.subr.mxu0 0.0
    %1370 = vmatpush1.msra.mxu0 %v1348
    %1371 = vmatprep.subr.mxu0 0.0
    %1372 = vmatpush1.msra.mxu0 %v1349
    %1373 = vmatprep.subr.mxu0 0.0
    %1374 = vmatpush1.msra.mxu0 %v1350
    %1375 = vmatprep.subr.mxu0 0.0
    %1376 = vmatpush1.msra.mxu0 %v1351
    %1377 = vmatprep.subr.mxu0 0.0
    %1378 = vmatpush1.msra.mxu0 %v1352
    %1379 = vmatprep.subr.mxu0 0.0
    %1380 = vmatpush1.msra.mxu0 %v1353
    %1381 = vmatprep.subr.mxu0 0.0
    %1382 = vmatpush1.msra.mxu0 %v1354
    %1383 = vmatprep.subr.mxu0 0.0
    %1384 = vmatpush1.msra.mxu0 %v1355
    %1385 = vmatprep.subr.mxu0 0.0
    %1386 = vmatpush1.msra.mxu0 %v1356
    %1387 = vmatprep.subr.mxu0 0.0
    %1388 = vmatpush1.msra.mxu0 %v1357
    %1389 = vmatprep.subr.mxu0 0.0
    %1390 = vmatpush1.msra.mxu0 %v1358
    %1391 = vmatprep.subr.mxu0 0.0
    %1392 = vmatpush1.msra.mxu0 0.0
    %1393 = vmatprep.subr.mxu0 0.0
    %1394 = vmatpush1.msra.mxu0 0.0
    %1395 = vmatprep.subr.mxu0 0.0
    %1396 = vmatpush1.msra.mxu0 0.0
    %1397 = vmatprep.subr.mxu0 0.0
    %1398 = vmatpush1.msra.mxu0 0.0
    %1399 = vmatprep.subr.mxu0 0.0
    %1400 = vmatpush1.msra.mxu0 0.0
    %1401 = vmatprep.subr.mxu0 0.0
    %1402 = vmatpush1.msra.mxu0 0.0
    %1403 = vmatprep.subr.mxu0 0.0
    %1404 = vmatpush1.msra.mxu0 0.0
    %1405 = vmatprep.subr.mxu0 0.0
    %1406 = vmatpush1.msra.mxu0 0.0
    %1407 = vmatprep.subr.mxu0 0.0
    %1408 = vmatpush1.msra.mxu0 0.0
    %1409 = vmatprep.subr.mxu0 0.0
    %1410 = vmatpush1.msra.mxu0 0.0
    %1411 = vmatprep.subr.mxu0 0.0
    %1412 = vmatpush1.msra.mxu0 0.0
    %1413 = vmatprep.subr.mxu0 0.0
    %1414 = vmatpush1.msra.mxu0 0.0
    %1415 = vmatprep.subr.mxu0 0.0
    %1416 = vmatpush1.msra.mxu0 0.0
    %1417 = vmatprep.subr.mxu0 0.0
    %1418 = vmatpush1.msra.mxu0 0.0
    %1419 = vmatprep.subr.mxu0 0.0
    %1420 = vmatpush1.msra.mxu0 0.0
    %1421 = vmatprep.subr.mxu0 0.0
    %1422 = vmatpush1.msra.mxu0 0.0
    %1423 = vmatprep.mubr.f32.mxu0 0.0
    %1424 = vmatmul.mubr.f32.gmra.mrb[0].mxu0 %v953
    %v1425 = vpop.f32.mrb[0].mxu0
    %v1426 = vadd.f32 0.0, %v1425
    %v1427 = vpop.f32.mrb[0].mxu0
    %1428 = vmatprep.mubr.f32.mxu0 0.0
    %1429 = vmatmul.mubr.f32.gmra.mrb[0].mxu0 %v954
    %v1430 = vpop.f32.mrb[0].mxu0
    %v1431 = vadd.f32 0.0, %v1430
    %v1432 = vpop.f32.mrb[0].mxu0
    %1433 = vmatprep.mubr.f32.mxu0 0.0
    %1434 = vmatmul.mubr.f32.gmra.mrb[0].mxu0 %v955
    %v1435 = vpop.f32.mrb[0].mxu0
    %v1436 = vadd.f32 0.0, %v1435
    %v1437 = vpop.f32.mrb[0].mxu0
    %1438 = vmatprep.mubr.f32.mxu0 0.0
    %1439 = vmatmul.mubr.f32.gmra.mrb[0].mxu0 %v956
    %v1440 = vpop.f32.mrb[0].mxu0
    %v1441 = vadd.f32 0.0, %v1440
    %v1442 = vpop.f32.mrb[0].mxu0
    %1443 = vdwg.mxu0
    %1444 = vmatprep.subr.mxu0 0.0
    %1445 = vmatpush1.msra.mxu0 %v1426
    %1446 = vmatprep.subr.mxu0 0.0
    %1447 = vmatpush1.msra.mxu0 %v1431
    %1448 = vmatprep.subr.mxu0 0.0
    %1449 = vmatpush1.msra.mxu0 %v1436
    %1450 = vmatprep.subr.mxu0 0.0
    %1451 = vmatpush1.msra.mxu0 %v1441
    %1452 = vmatprep.subr.mxu0 0.0
    %1453 = vmatpush1.msra.mxu0 0.0
    %1454 = vmatprep.subr.mxu0 0.0
    %1455 = vmatpush1.msra.mxu0 0.0
    %1456 = vmatprep.subr.mxu0 0.0
    %1457 = vmatpush1.msra.mxu0 0.0
    %1458 = vmatprep.subr.mxu0 0.0
    %1459 = vmatpush1.msra.mxu0 0.0
    %1460 = vmatprep.subr.mxu0 0.0
    %1461 = vmatpush1.msra.mxu0 0.0
    %1462 = vmatprep.subr.mxu0 0.0
    %1463 = vmatpush1.msra.mxu0 0.0
    %1464 = vmatprep.subr.mxu0 0.0
    %1465 = vmatpush1.msra.mxu0 0.0
    %1466 = vmatprep.subr.mxu0 0.0
    %1467 = vmatpush1.msra.mxu0 0.0
    %1468 = vmatprep.subr.mxu0 0.0
    %1469 = vmatpush1.msra.mxu0 0.0
    %1470 = vmatprep.subr.mxu0 0.0
    %1471 = vmatpush1.msra.mxu0 0.0
    %1472 = vmatprep.subr.mxu0 0.0
    %1473 = vmatpush1.msra.mxu0 0.0
    %1474 = vmatprep.subr.mxu0 0.0
    %1475 = vmatpush1.msra.mxu0 0.0
    %1476 = vmatprep.subr.mxu0 0.0
    %1477 = vmatpush1.msra.mxu0 0.0
    %1478 = vmatprep.subr.mxu0 0.0
    %1479 = vmatpush1.msra.mxu0 0.0
    %1480 = vmatprep.subr.mxu0 0.0
    %1481 = vmatpush1.msra.mxu0 0.0
    %1482 = vmatprep.subr.mxu0 0.0
    %1483 = vmatpush1.msra.mxu0 0.0
    %1484 = vmatprep.subr.mxu0 0.0
    %1485 = vmatpush1.msra.mxu0 0.0
    %1486 = vmatprep.subr.mxu0 0.0
    %1487 = vmatpush1.msra.mxu0 0.0
    %1488 = vmatprep.subr.mxu0 0.0
    %1489 = vmatpush1.msra.mxu0 0.0
    %1490 = vmatprep.subr.mxu0 0.0
    %1491 = vmatpush1.msra.mxu0 0.0
    %1492 = vmatprep.subr.mxu0 0.0
    %1493 = vmatpush1.msra.mxu0 0.0
    %1494 = vmatprep.subr.mxu0 0.0
    %1495 = vmatpush1.msra.mxu0 0.0
    %1496 = vmatprep.subr.mxu0 0.0
    %1497 = vmatpush1.msra.mxu0 0.0
    %1498 = vmatprep.subr.mxu0 0.0
    %1499 = vmatpush1.msra.mxu0 0.0
    %1500 = vmatprep.subr.mxu0 0.0
    %1501 = vmatpush1.msra.mxu0 0.0
    %1502 = vmatprep.subr.mxu0 0.0
    %1503 = vmatpush1.msra.mxu0 0.0
    %1504 = vmatprep.subr.mxu0 0.0
    %1505 = vmatpush1.msra.mxu0 0.0
    %1506 = vmatprep.subr.mxu0 0.0
    %1507 = vmatpush1.msra.mxu0 0.0
    %1508 = vmatprep.mubr.f32.mxu0 0.0
    %1509 = vmatmul.mubr.f32.gmra.mrb[0].mxu0 %v637
    %v1510 = vpop.f32.mrb[0].mxu0
    %v1511 = vadd.f32 0.0, %v1510
    %v1512 = vpop.f32.mrb[0].mxu0
    %1513 = vmatprep.mubr.f32.mxu0 0.0
    %1514 = vmatmul.mubr.f32.gmra.mrb[0].mxu0 %v640
    %v1515 = vpop.f32.mrb[0].mxu0
    %v1516 = vadd.f32 0.0, %v1515
    %v1517 = vpop.f32.mrb[0].mxu0
    %1518 = vmatprep.mubr.f32.mxu0 0.0
    %1519 = vmatmul.mubr.f32.gmra.mrb[0].mxu0 %v643
    %v1520 = vpop.f32.mrb[0].mxu0
    %v1521 = vadd.f32 0.0, %v1520
    %v1522 = vpop.f32.mrb[0].mxu0
    %1523 = vmatprep.mubr.f32.mxu0 0.0
    %1524 = vmatmul.mubr.f32.gmra.mrb[0].mxu0 %v646
    %v1525 = vpop.f32.mrb[0].mxu0
    %v1526 = vadd.f32 0.0, %v1525
    %v1527 = vpop.f32.mrb[0].mxu0
    %1528 = vdwg.mxu0
    %v1529 = vadd.f32 %v1338, %v1511
    %v1530 = vadd.f32 %v1339, %v1516
    %v1531 = vadd.f32 %v1340, %v1521
    %v1532 = vadd.f32 %v1341, %v1526
    %s1533 = scalar_lea.vmem [#allocation10], 384
    %v1534 = vld [vmem:[%s1533] sm:$0xff]
    %v1535 = vld [vmem:[%s1533 + $0x8] sm:$0xff]
    %v1536 = vld [vmem:[%s1533 + $0x10] sm:$0xff]
    %v1537 = vld [vmem:[%s1533 + $0x18] sm:$0xff]
    %v1538 = vld [vmem:[%s1533 + $0x20] sm:$0xff]
    %v1539 = vld [vmem:[%s1533 + $0x28] sm:$0xff]
    %v1540 = vld [vmem:[%s1533 + $0x30] sm:$0xff]
    %v1541 = vld [vmem:[%s1533 + $0x38] sm:$0xff]
    %v1542 = vld [vmem:[%s1533 + $0x40] sm:$0xff]
    %v1543 = vld [vmem:[%s1533 + $0x48] sm:$0xff]
    %v1544 = vld [vmem:[%s1533 + $0x50] sm:$0xff]
    %v1545 = vld [vmem:[%s1533 + $0x58] sm:$0xff]
    %v1546 = vld [vmem:[%s1533 + $0x60] sm:$0xff]
    %v1547 = vld [vmem:[%s1533 + $0x68] sm:$0xff]
    %v1548 = vld [vmem:[%s1533 + $0x70] sm:$0xff]
    %v1549 = vld [vmem:[%s1533 + $0x78] sm:$0xff]
    %1550 = vmatprep.subr.mxu0 0.0
    %1551 = vmatpush1.msra.mxu0 %v1534
    %1552 = vmatprep.subr.mxu0 0.0
    %1553 = vmatpush1.msra.mxu0 %v1535
    %1554 = vmatprep.subr.mxu0 0.0
    %1555 = vmatpush1.msra.mxu0 %v1536
    %1556 = vmatprep.subr.mxu0 0.0
    %1557 = vmatpush1.msra.mxu0 %v1537
    %1558 = vmatprep.subr.mxu0 0.0
    %1559 = vmatpush1.msra.mxu0 %v1538
    %1560 = vmatprep.subr.mxu0 0.0
    %1561 = vmatpush1.msra.mxu0 %v1539
    %1562 = vmatprep.subr.mxu0 0.0
    %1563 = vmatpush1.msra.mxu0 %v1540
    %1564 = vmatprep.subr.mxu0 0.0
    %1565 = vmatpush1.msra.mxu0 %v1541
    %1566 = vmatprep.subr.mxu0 0.0
    %1567 = vmatpush1.msra.mxu0 %v1542
    %1568 = vmatprep.subr.mxu0 0.0
    %1569 = vmatpush1.msra.mxu0 %v1543
    %1570 = vmatprep.subr.mxu0 0.0
    %1571 = vmatpush1.msra.mxu0 %v1544
    %1572 = vmatprep.subr.mxu0 0.0
    %1573 = vmatpush1.msra.mxu0 %v1545
    %1574 = vmatprep.subr.mxu0 0.0
    %1575 = vmatpush1.msra.mxu0 %v1546
    %1576 = vmatprep.subr.mxu0 0.0
    %1577 = vmatpush1.msra.mxu0 %v1547
    %1578 = vmatprep.subr.mxu0 0.0
    %1579 = vmatpush1.msra.mxu0 %v1548
    %1580 = vmatprep.subr.mxu0 0.0
    %1581 = vmatpush1.msra.mxu0 %v1549
    %1582 = vmatprep.subr.mxu0 0.0
    %1583 = vmatpush1.msra.mxu0 0.0
    %1584 = vmatprep.subr.mxu0 0.0
    %1585 = vmatpush1.msra.mxu0 0.0
    %1586 = vmatprep.subr.mxu0 0.0
    %1587 = vmatpush1.msra.mxu0 0.0
    %1588 = vmatprep.subr.mxu0 0.0
    %1589 = vmatpush1.msra.mxu0 0.0
    %1590 = vmatprep.subr.mxu0 0.0
    %1591 = vmatpush1.msra.mxu0 0.0
    %1592 = vmatprep.subr.mxu0 0.0
    %1593 = vmatpush1.msra.mxu0 0.0
    %1594 = vmatprep.subr.mxu0 0.0
    %1595 = vmatpush1.msra.mxu0 0.0
    %1596 = vmatprep.subr.mxu0 0.0
    %1597 = vmatpush1.msra.mxu0 0.0
    %1598 = vmatprep.subr.mxu0 0.0
    %1599 = vmatpush1.msra.mxu0 0.0
    %1600 = vmatprep.subr.mxu0 0.0
    %1601 = vmatpush1.msra.mxu0 0.0
    %1602 = vmatprep.subr.mxu0 0.0
    %1603 = vmatpush1.msra.mxu0 0.0
    %1604 = vmatprep.subr.mxu0 0.0
    %1605 = vmatpush1.msra.mxu0 0.0
    %1606 = vmatprep.subr.mxu0 0.0
    %1607 = vmatpush1.msra.mxu0 0.0
    %1608 = vmatprep.subr.mxu0 0.0
    %1609 = vmatpush1.msra.mxu0 0.0
    %1610 = vmatprep.subr.mxu0 0.0
    %1611 = vmatpush1.msra.mxu0 0.0
    %1612 = vmatprep.subr.mxu0 0.0
    %1613 = vmatpush1.msra.mxu0 0.0
    %1614 = vmatprep.mubr.f32.mxu0 0.0
    %1615 = vmatmul.mubr.f32.gmra.mrb[0].mxu0 %v953
    %v1616 = vpop.f32.mrb[0].mxu0
    %v1617 = vadd.f32 0.0, %v1616
    %v1618 = vpop.f32.mrb[0].mxu0
    %1619 = vmatprep.mubr.f32.mxu0 0.0
    %1620 = vmatmul.mubr.f32.gmra.mrb[0].mxu0 %v954
    %v1621 = vpop.f32.mrb[0].mxu0
    %v1622 = vadd.f32 0.0, %v1621
    %v1623 = vpop.f32.mrb[0].mxu0
    %1624 = vmatprep.mubr.f32.mxu0 0.0
    %1625 = vmatmul.mubr.f32.gmra.mrb[0].mxu0 %v955
    %v1626 = vpop.f32.mrb[0].mxu0
    %v1627 = vadd.f32 0.0, %v1626
    %v1628 = vpop.f32.mrb[0].mxu0
    %1629 = vmatprep.mubr.f32.mxu0 0.0
    %1630 = vmatmul.mubr.f32.gmra.mrb[0].mxu0 %v956
    %v1631 = vpop.f32.mrb[0].mxu0
    %v1632 = vadd.f32 0.0, %v1631
    %v1633 = vpop.f32.mrb[0].mxu0
    %1634 = vdwg.mxu0
    %1635 = vmatprep.subr.mxu0 0.0
    %1636 = vmatpush1.msra.mxu0 %v1617
    %1637 = vmatprep.subr.mxu0 0.0
    %1638 = vmatpush1.msra.mxu0 %v1622
    %1639 = vmatprep.subr.mxu0 0.0
    %1640 = vmatpush1.msra.mxu0 %v1627
    %1641 = vmatprep.subr.mxu0 0.0
    %1642 = vmatpush1.msra.mxu0 %v1632
    %1643 = vmatprep.subr.mxu0 0.0
    %1644 = vmatpush1.msra.mxu0 0.0
    %1645 = vmatprep.subr.mxu0 0.0
    %1646 = vmatpush1.msra.mxu0 0.0
    %1647 = vmatprep.subr.mxu0 0.0
    %1648 = vmatpush1.msra.mxu0 0.0
    %1649 = vmatprep.subr.mxu0 0.0
    %1650 = vmatpush1.msra.mxu0 0.0
    %1651 = vmatprep.subr.mxu0 0.0
    %1652 = vmatpush1.msra.mxu0 0.0
    %1653 = vmatprep.subr.mxu0 0.0
    %1654 = vmatpush1.msra.mxu0 0.0
    %1655 = vmatprep.subr.mxu0 0.0
    %1656 = vmatpush1.msra.mxu0 0.0
    %1657 = vmatprep.subr.mxu0 0.0
    %1658 = vmatpush1.msra.mxu0 0.0
    %1659 = vmatprep.subr.mxu0 0.0
    %1660 = vmatpush1.msra.mxu0 0.0
    %1661 = vmatprep.subr.mxu0 0.0
    %1662 = vmatpush1.msra.mxu0 0.0
    %1663 = vmatprep.subr.mxu0 0.0
    %1664 = vmatpush1.msra.mxu0 0.0
    %1665 = vmatprep.subr.mxu0 0.0
    %1666 = vmatpush1.msra.mxu0 0.0
    %1667 = vmatprep.subr.mxu0 0.0
    %1668 = vmatpush1.msra.mxu0 0.0
    %1669 = vmatprep.subr.mxu0 0.0
    %1670 = vmatpush1.msra.mxu0 0.0
    %1671 = vmatprep.subr.mxu0 0.0
    %1672 = vmatpush1.msra.mxu0 0.0
    %1673 = vmatprep.subr.mxu0 0.0
    %1674 = vmatpush1.msra.mxu0 0.0
    %1675 = vmatprep.subr.mxu0 0.0
    %1676 = vmatpush1.msra.mxu0 0.0
    %1677 = vmatprep.subr.mxu0 0.0
    %1678 = vmatpush1.msra.mxu0 0.0
    %1679 = vmatprep.subr.mxu0 0.0
    %1680 = vmatpush1.msra.mxu0 0.0
    %1681 = vmatprep.subr.mxu0 0.0
    %1682 = vmatpush1.msra.mxu0 0.0
    %1683 = vmatprep.subr.mxu0 0.0
    %1684 = vmatpush1.msra.mxu0 0.0
    %1685 = vmatprep.subr.mxu0 0.0
    %1686 = vmatpush1.msra.mxu0 0.0
    %1687 = vmatprep.subr.mxu0 0.0
    %1688 = vmatpush1.msra.mxu0 0.0
    %1689 = vmatprep.subr.mxu0 0.0
    %1690 = vmatpush1.msra.mxu0 0.0
    %1691 = vmatprep.subr.mxu0 0.0
    %1692 = vmatpush1.msra.mxu0 0.0
    %1693 = vmatprep.subr.mxu0 0.0
    %1694 = vmatpush1.msra.mxu0 0.0
    %1695 = vmatprep.subr.mxu0 0.0
    %1696 = vmatpush1.msra.mxu0 0.0
    %1697 = vmatprep.subr.mxu0 0.0
    %1698 = vmatpush1.msra.mxu0 0.0
    %1699 = vmatprep.mubr.f32.mxu0 0.0
    %1700 = vmatmul.mubr.f32.gmra.mrb[0].mxu0 %v845
    %v1701 = vpop.f32.mrb[0].mxu0
    %v1702 = vadd.f32 0.0, %v1701
    %v1703 = vpop.f32.mrb[0].mxu0
    %1704 = vmatprep.mubr.f32.mxu0 0.0
    %1705 = vmatmul.mubr.f32.gmra.mrb[0].mxu0 %v848
    %v1706 = vpop.f32.mrb[0].mxu0
    %v1707 = vadd.f32 0.0, %v1706
    %v1708 = vpop.f32.mrb[0].mxu0
    %1709 = vmatprep.mubr.f32.mxu0 0.0
    %1710 = vmatmul.mubr.f32.gmra.mrb[0].mxu0 %v851
    %v1711 = vpop.f32.mrb[0].mxu0
    %v1712 = vadd.f32 0.0, %v1711
    %v1713 = vpop.f32.mrb[0].mxu0
    %1714 = vmatprep.mubr.f32.mxu0 0.0
    %1715 = vmatmul.mubr.f32.gmra.mrb[0].mxu0 %v854
    %v1716 = vpop.f32.mrb[0].mxu0
    %v1717 = vadd.f32 0.0, %v1716
    %v1718 = vpop.f32.mrb[0].mxu0
    %1719 = vdwg.mxu0
    %v1720 = vadd.f32 %v1529, %v1702
    %v1721 = vadd.f32 %v1530, %v1707
    %v1722 = vadd.f32 %v1531, %v1712
    %v1723 = vadd.f32 %v1532, %v1717
    %1724 = vst [vmem:[#allocation13] sm:$0xff] %v1720
    %1725 = vst [vmem:[#allocation13 + $0x8] sm:$0xff] %v1721
    %1726 = vst [vmem:[#allocation13 + $0x10] sm:$0xff] %v1722
    %1727 = vst [vmem:[#allocation13 + $0x18] sm:$0xff] %v1723
    // Predicated region
    $region50: #{tpu_custom_call.1} parent=1 // pred_check
      _
    $region51: #{tpu_custom_call.1} parent=1 // pred_check_branch
      %1729 = sbr.rel (0) target = $region53
    $region52: #{tpu_custom_call.1} parent=1 // pred_region
      %s1731 = ssub.s32 512, 512
      %1732 = vsyncadd [#allocation4], %s1731
      %s1733 = sshll.u32 [#allocation13], 4
      %s1734 = int_to_ptr.vmem [resolvable:$true] %s1733
      %1739 = dma.vmem_to_hbm [thread:$0]  %s1734, 512, %s6, [#allocation4], 128, 128, 8
    $region53: #{tpu_custom_call.1} parent=1 // pred_fallthru
      _
    // Predicated region
    $region54: #{tpu_custom_call.1} parent=1 // pred_check
      _
    $region55: #{tpu_custom_call.1} parent=1 // pred_check_branch
      %1741 = sbr.rel (0) target = $region57
    $region56: #{tpu_custom_call.1} parent=1 // pred_region
      %1742 = dma.done [#allocation4], 512
    $region57: #{tpu_custom_call.1} parent=1 // pred_fallthru
      _
    %1743 = vsyncpa [#allocation3], 1
    %1744 = vsyncpa [#allocation6], 1
    %1745 = vsyncpa [#allocation9], 1
    %1746 = vsyncpa [#allocation12], 1
    %1747 = vsyncpa [#allocation4], 1

</llo_original>
